<compile_context>
chip_gen: v5e
topology: v5e:2x2
jax: 0.10.0
libtpu: 0.0.40
codegen_flags: <defaults>
</compile_context>

<pallas_src>
import functools

import jax
import jax.numpy as jnp
from jax import lax
from jax.experimental import pallas as pl
from jax.experimental.pallas import tpu as pltpu


# ----------------------------- small math helpers (in-kernel, f32) -----------------------------

def _sigmoid(v):
    z = jnp.exp(-jnp.abs(v))
    return jnp.where(v >= 0.0, 1.0 / (1.0 + z), z / (1.0 + z))


def _softplus(v):
    return jnp.maximum(v, 0.0) + jnp.log(1.0 + jnp.exp(-jnp.abs(v)))


def _elu(v):
    return jnp.where(v > 0.0, v, jnp.exp(jnp.minimum(v, 0.0)) - 1.0)


# ----------------------------- fused kernel -----------------------------

def fused_mamba_tcm_kernel(frames_ref, pos_ref, wbb_ref, bbb_ref,
                           w1_ref, b1_ref, w2_ref, b2_ref,
                           w_in_ref, conv_w_ref, conv_b_ref,
                           w_xp_ref, w_dt_ref, b_dt_ref,
                           a_log_t_ref, d_ref, w_of_ref, b_fc_ref,
                           out_ref,
                           da_ref, dbx_ref, cb_ref, y2_ref,
                           *, seq_len):
    n_tok = out_ref.shape[0]                       # bs * T
    bs = n_tok // seq_len
    d_inner = conv_w_ref.shape[1]
    k_conv = conv_w_ref.shape[0]
    d_state = a_log_t_ref.shape[0]
    dt_rank = w_dt_ref.shape[0]
    f_dim = wbb_ref.shape[1]
    n_mid = frames_ref.shape[0] // n_tok           # s_frames - 2

    # ---- synthetic frozen backbone: ONE matmul over all (frame, token) rows, then mean pool ----
    h_all = jnp.tanh(
        jnp.dot(frames_ref[...], wbb_ref[...], preferred_element_type=jnp.float32)
        + bbb_ref[...])                                                  # ((S-2)*N, F) f32
    pooled = jnp.zeros((n_tok, f_dim), jnp.float32)
    for s in range(n_mid):                                               # frame-major contiguous slabs
        pooled = pooled + h_all[s * n_tok:(s + 1) * n_tok, :]
    pooled = pooled * (1.0 / float(n_mid))

    # ---- embed_layer: Linear(+folded BN) -> ELU -> Linear ----
    h1 = jnp.dot(pooled.astype(jnp.bfloat16), w1_ref[...],
                 preferred_element_type=jnp.float32) + b1_ref[...]
    he = _elu(h1)
    e = jnp.dot(he.astype(jnp.bfloat16), w2_ref[...],
                preferred_element_type=jnp.float32) + b2_ref[...]        # (N, E)

    # ---- Mamba in_proj (bias-free), packed [x | z] -> one 128-lane matmul ----
    xz = jnp.dot(e.astype(jnp.bfloat16), w_in_ref[...],
                 preferred_element_type=jnp.float32)                     # (N, 2*Di)
    x_part = xz[:, :d_inner]
    z_part = xz[:, d_inner:]

    # ---- causal depthwise conv1d along time: K static shift-downs + per-row boundary mask ----
    pos = pos_ref[...]                                                   # (N, 1) time index in sequence
    xc = conv_b_ref[...] + jnp.zeros((n_tok, d_inner), jnp.float32)
    for k in range(k_conv):
        d = k_conv - 1 - k                                               # tap delay
        if d == 0:
            shifted = x_part
        else:
            shifted = jnp.concatenate(
                [jnp.zeros((d, d_inner), jnp.float32), x_part[:n_tok - d, :]], axis=0)
            mask = (pos >= float(d)).astype(jnp.float32)                 # zero cross-sequence leakage
            shifted = shifted * mask
        xc = xc + conv_w_ref[k:k + 1, :] * shifted
    xc = xc * _sigmoid(xc)                                               # SiLU

    # ---- packed x-projection -> [dt_raw | B | C] in one matmul ----
    xbc = jnp.dot(xc.astype(jnp.bfloat16), w_xp_ref[...],
                  preferred_element_type=jnp.float32)                    # (N, R + 2*Ns)
    dt_raw = xbc[:, :dt_rank]
    b_mat = xbc[:, dt_rank:dt_rank + d_state]
    c_mat = xbc[:, dt_rank + d_state:dt_rank + 2 * d_state]

    # dt projection: rank is tiny (2) -> VPU broadcast-FMA instead of a 2-wide MXU matmul
    dt_lin = jnp.zeros((n_tok, d_inner), jnp.float32) + b_dt_ref[...]
    for r in range(dt_rank):
        dt_lin = dt_lin + dt_raw[:, r:r + 1] * w_dt_ref[r:r + 1, :]
    dt = _softplus(dt_lin)                                               # (N, Di)

    # ---- time-major, batch-in-lanes precompute of scan coefficients for ALL timesteps ----
    a_t = -jnp.exp(a_log_t_ref[...])                                     # (Ns, Di)
    dtx = dt * xc                                                        # (N, Di)
    for b in range(bs):                                                  # static lane-slab writes
        r0, r1 = b * seq_len, (b + 1) * seq_len
        c0, c1 = b * d_inner, (b + 1) * d_inner
        da_ref[:, :, c0:c1] = jnp.exp(dt[r0:r1][:, None, :] * a_t[None, :, :])
        dbx_ref[:, :, c0:c1] = b_mat[r0:r1][:, :, None] * dtx[r0:r1][:, None, :]
        cb_ref[:, :, c0:c1] = jnp.broadcast_to(c_mat[r0:r1][:, :, None],
                                               (seq_len, d_state, d_inner))

    # ---- sequential selective scan: T steps of pure VPU work on (Ns, bs*Di) tiles ----
    def step(t, h):
        h = da_ref[t] * h + dbx_ref[t]                                   # (Ns, bs*Di)
        y2_ref[pl.ds(t, 1), :] = jnp.sum(cb_ref[t] * h, axis=0, keepdims=True)
        return h

    lax.fori_loop(0, seq_len, step,
                  jnp.zeros((d_state, bs * d_inner), jnp.float32), unroll=True)

    # back to token-major (bs*T, Di) via static lane slabs
    y = jnp.concatenate(
        [y2_ref[:, b * d_inner:(b + 1) * d_inner] for b in range(bs)], axis=0)

    y = y + d_ref[...] * xc                                              # skip term D*x
    y = y * (z_part * _sigmoid(z_part))                                  # gate: y * silu(z)

    # ---- fused out_proj @ fc (bias from fc), lane-padded to 128 for a dense store ----
    logits = jnp.dot(y.astype(jnp.bfloat16), w_of_ref[...],
                     preferred_element_type=jnp.float32) + b_fc_ref[...] # (N, 128)
    out_ref[...] = logits.astype(out_ref.dtype)


# ----------------------------- wrapper -----------------------------

def mamba_tcm_forward(x, params):
    bs, t_ctx, l_raw = x.shape
    s_frames = params["n_frames"]
    p_len = l_raw // s_frames
    n = bs * t_ctx
    d_inner = params["conv_w"].shape[1]
    d_state = params["a_log_t"].shape[0]
    n_classes = params["w_fc"].shape[1]
    nc_pad = ((n_classes + 127) // 128) * 128

    bf = lambda a: a.astype(jnp.bfloat16)

    # glue: frame the 1-channel signal, keep only frames[1:-1], frame-major layout for the
    # fused backbone matmul + contiguous-slab mean pooling inside the kernel.
    frames = x.reshape(n, s_frames, p_len)
    frames_fm = jnp.transpose(frames[:, 1:-1, :], (1, 0, 2)).reshape((s_frames - 2) * n, p_len)
    frames_fm = bf(frames_fm)

    # per-token position-within-sequence (for causal-conv boundary masking in the kernel)
    pos = (jnp.arange(n, dtype=jnp.float32) % float(t_ctx)).reshape(n, 1)

    # fold BatchNorm1d (inference mode) into the first embed Linear
    inv_std = lax.rsqrt(params["bn_var"] + 1e-5)
    scale = params["bn_gamma"] * inv_std                                          # (1, E)
    w1f = params["w1"] * scale                                                    # (F, E)
    b1f = (params["b1"] - params["bn_mean"]) * scale + params["bn_beta"]          # (1, E)

    # packed / padded weights (bf16 for MXU, biases & per-channel params stay f32)
    w_in = bf(jnp.concatenate([params["w_in_x"], params["w_in_z"]], axis=1))      # (E, 2*Di)
    w_xp = bf(jnp.concatenate([params["w_x_dt"], params["w_x_b"], params["w_x_c"]], axis=1))

    # fuse out_proj (bias-free) with the final fc; pad classes to a full lane tile
    w_of = params["w_out"] @ params["w_fc"]                                       # (Di, 5) f32
    w_of_pad = bf(jnp.pad(w_of, ((0, 0), (0, nc_pad - n_classes))))
    b_fc_pad = jnp.pad(params["b_fc"], ((0, 0), (0, nc_pad - n_classes)))

    args = [
        frames_fm, pos,
        bf(params["wbb"]), params["bbb"],
        bf(w1f), b1f,
        bf(params["w2"]), params["b2"],
        w_in, params["conv_w"], params["conv_b"],
        w_xp, params["w_dt"], params["b_dt"],
        params["a_log_t"], params["d_vec"],
        w_of_pad, b_fc_pad,
    ]
    in_specs = [pl.BlockSpec(a.shape, lambda i: (0, 0)) for a in args]

    out_pad = pl.pallas_call(
        functools.partial(fused_mamba_tcm_kernel, seq_len=t_ctx),
        out_shape=jax.ShapeDtypeStruct((n, nc_pad), jnp.float32),
        grid=(1,),
        in_specs=in_specs,
        out_specs=pl.BlockSpec((n, nc_pad), lambda i: (0, 0)),
        scratch_shapes=[
            pltpu.VMEM((t_ctx, d_state, bs * d_inner), jnp.float32),   # exp(dt*A), time-major
            pltpu.VMEM((t_ctx, d_state, bs * d_inner), jnp.float32),   # B*dt*x,    time-major
            pltpu.VMEM((t_ctx, d_state, bs * d_inner), jnp.float32),   # C broadcast, time-major
            pltpu.VMEM((t_ctx, bs * d_inner), jnp.float32),            # scan output rows
        ],
        compiler_params=pltpu.CompilerParams(dimension_semantics=("arbitrary",)),
    )(*args)

    return out_pad[:, :n_classes].reshape(bs, t_ctx, n_classes)


# ----------------------------- deterministic parameter init -----------------------------

def init_params(key, *, backbone_final_length=64, embed_dim=32, n_frames=8,
                frame_len=32, d_state=16, d_conv=4, expand=2, n_classes=5):
    d_inner = expand * embed_dim
    dt_rank = max(1, -(-embed_dim // 16))  # ceil(embed_dim / 16)
    keys = jax.random.split(key, 18)

    def rnd(k, shape, scale=0.1):
        return (scale * jax.random.normal(k, shape)).astype(jnp.float32)

    p = {"n_frames": n_frames}
    # synthetic backbone (stand-in) + embed_layer
    p["wbb"] = rnd(keys[0], (frame_len, backbone_final_length))
    p["bbb"] = rnd(keys[1], (1, backbone_final_length))
    p["w1"] = rnd(keys[2], (backbone_final_length, embed_dim))
    p["b1"] = rnd(keys[3], (1, embed_dim))
    p["bn_gamma"] = jnp.ones((1, embed_dim), jnp.float32)
    p["bn_beta"] = jnp.zeros((1, embed_dim), jnp.float32)
    p["bn_mean"] = jnp.zeros((1, embed_dim), jnp.float32)
    p["bn_var"] = jnp.ones((1, embed_dim), jnp.float32)
    p["w2"] = rnd(keys[4], (embed_dim, embed_dim))
    p["b2"] = rnd(keys[5], (1, embed_dim))
    # Mamba(d_model=embed_dim, d_state=16, d_conv=4, expand=2), one layer
    p["w_in_x"] = rnd(keys[6], (embed_dim, d_inner))
    p["w_in_z"] = rnd(keys[7], (embed_dim, d_inner))
    p["conv_w"] = rnd(keys[8], (d_conv, d_inner))
    p["conv_b"] = rnd(keys[9], (1, d_inner))
    p["w_x_dt"] = rnd(keys[10], (d_inner, dt_rank))
    p["w_x_b"] = rnd(keys[11], (d_inner, d_state))
    p["w_x_c"] = rnd(keys[12], (d_inner, d_state))
    p["w_dt"] = rnd(keys[13], (dt_rank, d_inner))
    p["b_dt"] = rnd(keys[14], (1, d_inner))
    a_log = jnp.log(jnp.arange(1, d_state + 1, dtype=jnp.float32))       # Mamba S4D init
    p["a_log_t"] = jnp.asarray(jnp.broadcast_to(a_log[:, None], (d_state, d_inner)),
                               dtype=jnp.float32)
    p["d_vec"] = jnp.ones((1, d_inner), jnp.float32)
    p["w_out"] = rnd(keys[15], (d_inner, embed_dim))
    # final fc: embed_dim -> 5
    p["w_fc"] = rnd(keys[16], (embed_dim, n_classes))
    p["b_fc"] = rnd(keys[17], (1, n_classes))
    return p


if __name__ == "__main__":
    bs, t_ctx = 2, 8
    n_frames, frame_len = 8, 32
    l_raw = n_frames * frame_len                      # raw 1-channel signal per temporal step

    key = jax.random.PRNGKey(0)
    kx, kp = jax.random.split(key)
    x = jax.random.normal(kx, (bs, t_ctx, l_raw), dtype=jnp.float32)
    params = init_params(kp, n_frames=n_frames, frame_len=frame_len)

    out = mamba_tcm_forward(x, params)
    out = jax.block_until_ready(out)
    assert out.shape == (bs, t_ctx, 5) and out.dtype == jnp.float32
    assert bool(jnp.all(jnp.isfinite(out)))
    print("KERNEL_OK")
</pallas_src>

<mosaic_0001>
module attributes {stable_mosaic.version = 11 : i64} {
  func.func @fused_mamba_tcm_kernel(%arg0: i32, %arg1: memref<96x32xbf16, #tpu.memory_space<vmem>>, %arg2: memref<16x1xf32, #tpu.memory_space<vmem>>, %arg3: memref<32x64xbf16, #tpu.memory_space<vmem>>, %arg4: memref<1x64xf32, #tpu.memory_space<vmem>>, %arg5: memref<64x32xbf16, #tpu.memory_space<vmem>>, %arg6: memref<1x32xf32, #tpu.memory_space<vmem>>, %arg7: memref<32x32xbf16, #tpu.memory_space<vmem>>, %arg8: memref<1x32xf32, #tpu.memory_space<vmem>>, %arg9: memref<32x128xbf16, #tpu.memory_space<vmem>>, %arg10: memref<4x64xf32, #tpu.memory_space<vmem>>, %arg11: memref<1x64xf32, #tpu.memory_space<vmem>>, %arg12: memref<64x34xbf16, #tpu.memory_space<vmem>>, %arg13: memref<2x64xf32, #tpu.memory_space<vmem>>, %arg14: memref<1x64xf32, #tpu.memory_space<vmem>>, %arg15: memref<16x64xf32, #tpu.memory_space<vmem>>, %arg16: memref<1x64xf32, #tpu.memory_space<vmem>>, %arg17: memref<64x128xbf16, #tpu.memory_space<vmem>>, %arg18: memref<1x128xf32, #tpu.memory_space<vmem>>, %arg19: memref<16x128xf32, #tpu.memory_space<vmem>>, %arg20: memref<8x16x128xf32, #tpu.memory_space<vmem>>, %arg21: memref<8x16x128xf32, #tpu.memory_space<vmem>>, %arg22: memref<8x16x128xf32, #tpu.memory_space<vmem>>, %arg23: memref<8x128xf32, #tpu.memory_space<vmem>>) attributes {dimension_semantics = [#tpu.dimension_semantics<arbitrary>], iteration_bounds = array<i64: 1>, scalar_prefetch = 0 : i64, scratch_operands = 4 : i64, tpu.core_type = #tpu.core_type<tc>, window_params = [{pipeline_mode = #tpu.pipeline_mode<synchronous>, transform_indices = @transform_0, window_bounds = array<i64: 96, 32>}, {pipeline_mode = #tpu.pipeline_mode<synchronous>, transform_indices = @transform_1, window_bounds = array<i64: 16, 1>}, {pipeline_mode = #tpu.pipeline_mode<synchronous>, transform_indices = @transform_2, window_bounds = array<i64: 32, 64>}, {pipeline_mode = #tpu.pipeline_mode<synchronous>, transform_indices = @transform_3, window_bounds = array<i64: 1, 64>}, {pipeline_mode = #tpu.pipeline_mode<synchronous>, transform_indices = @transform_4, window_bounds = array<i64: 64, 32>}, {pipeline_mode = #tpu.pipeline_mode<synchronous>, transform_indices = @transform_5, window_bounds = array<i64: 1, 32>}, {pipeline_mode = #tpu.pipeline_mode<synchronous>, transform_indices = @transform_6, window_bounds = array<i64: 32, 32>}, {pipeline_mode = #tpu.pipeline_mode<synchronous>, transform_indices = @transform_7, window_bounds = array<i64: 1, 32>}, {pipeline_mode = #tpu.pipeline_mode<synchronous>, transform_indices = @transform_8, window_bounds = array<i64: 32, 128>}, {pipeline_mode = #tpu.pipeline_mode<synchronous>, transform_indices = @transform_9, window_bounds = array<i64: 4, 64>}, {pipeline_mode = #tpu.pipeline_mode<synchronous>, transform_indices = @transform_10, window_bounds = array<i64: 1, 64>}, {pipeline_mode = #tpu.pipeline_mode<synchronous>, transform_indices = @transform_11, window_bounds = array<i64: 64, 34>}, {pipeline_mode = #tpu.pipeline_mode<synchronous>, transform_indices = @transform_12, window_bounds = array<i64: 2, 64>}, {pipeline_mode = #tpu.pipeline_mode<synchronous>, transform_indices = @transform_13, window_bounds = array<i64: 1, 64>}, {pipeline_mode = #tpu.pipeline_mode<synchronous>, transform_indices = @transform_14, window_bounds = array<i64: 16, 64>}, {pipeline_mode = #tpu.pipeline_mode<synchronous>, transform_indices = @transform_15, window_bounds = array<i64: 1, 64>}, {pipeline_mode = #tpu.pipeline_mode<synchronous>, transform_indices = @transform_16, window_bounds = array<i64: 64, 128>}, {pipeline_mode = #tpu.pipeline_mode<synchronous>, transform_indices = @transform_17, window_bounds = array<i64: 1, 128>}, {pipeline_mode = #tpu.pipeline_mode<synchronous>, transform_indices = @transform_18, window_bounds = array<i64: 16, 128>}]} {
    %c0 = arith.constant 0 : index
    %c0_0 = arith.constant 0 : index
    %0 = vector.load %arg1[%c0, %c0_0] : memref<96x32xbf16, #tpu.memory_space<vmem>>, vector<96x32xbf16>
    %c0_1 = arith.constant 0 : index
    %c0_2 = arith.constant 0 : index
    %1 = vector.load %arg3[%c0_1, %c0_2] : memref<32x64xbf16, #tpu.memory_space<vmem>>, vector<32x64xbf16>
    %cst = arith.constant dense<0.000000e+00> : vector<96x64xf32>
    %2 = tpu.matmul %0, %1, %cst {dimension_numbers = #tpu.dot_dimension_numbers<[1], [0], [0], [1], [0, 0, 1, 1], [], []>} : vector<96x32xbf16>, vector<32x64xbf16>, vector<96x64xf32> -> vector<96x64xf32>
    %c0_3 = arith.constant 0 : index
    %c0_4 = arith.constant 0 : index
    %3 = vector.load %arg4[%c0_3, %c0_4] : memref<1x64xf32, #tpu.memory_space<vmem>>, vector<1x64xf32>
    %4 = vector.broadcast %3 : vector<1x64xf32> to vector<96x64xf32>
    %5 = arith.addf %2, %4 : vector<96x64xf32>
    %6 = math.tanh %5 : vector<96x64xf32>
    %cst_5 = arith.constant 0.000000e+00 : f32
    %7 = vector.broadcast %cst_5 : f32 to vector<16x64xf32>
    %8 = vector.extract_strided_slice %6 {offsets = [0, 0], sizes = [16, 64], strides = [1, 1]} : vector<96x64xf32> to vector<16x64xf32>
    %9 = arith.addf %7, %8 : vector<16x64xf32>
    %10 = vector.extract_strided_slice %6 {offsets = [16, 0], sizes = [16, 64], strides = [1, 1]} : vector<96x64xf32> to vector<16x64xf32>
    %11 = arith.addf %9, %10 : vector<16x64xf32>
    %12 = vector.extract_strided_slice %6 {offsets = [32, 0], sizes = [16, 64], strides = [1, 1]} : vector<96x64xf32> to vector<16x64xf32>
    %13 = arith.addf %11, %12 : vector<16x64xf32>
    %14 = vector.extract_strided_slice %6 {offsets = [48, 0], sizes = [16, 64], strides = [1, 1]} : vector<96x64xf32> to vector<16x64xf32>
    %15 = arith.addf %13, %14 : vector<16x64xf32>
    %16 = vector.extract_strided_slice %6 {offsets = [64, 0], sizes = [16, 64], strides = [1, 1]} : vector<96x64xf32> to vector<16x64xf32>
    %17 = arith.addf %15, %16 : vector<16x64xf32>
    %18 = vector.extract_strided_slice %6 {offsets = [80, 0], sizes = [16, 64], strides = [1, 1]} : vector<96x64xf32> to vector<16x64xf32>
    %19 = arith.addf %17, %18 : vector<16x64xf32>
    %cst_6 = arith.constant 0.166666672 : f32
    %20 = vector.broadcast %cst_6 : f32 to vector<16x64xf32>
    %21 = arith.mulf %19, %20 : vector<16x64xf32>
    %22 = arith.truncf %21 : vector<16x64xf32> to vector<16x64xbf16>
    %c0_7 = arith.constant 0 : index
    %c0_8 = arith.constant 0 : index
    %23 = vector.load %arg5[%c0_7, %c0_8] : memref<64x32xbf16, #tpu.memory_space<vmem>>, vector<64x32xbf16>
    %cst_9 = arith.constant dense<0.000000e+00> : vector<16x32xf32>
    %24 = tpu.matmul %22, %23, %cst_9 {dimension_numbers = #tpu.dot_dimension_numbers<[1], [0], [0], [1], [0, 0, 1, 1], [], []>} : vector<16x64xbf16>, vector<64x32xbf16>, vector<16x32xf32> -> vector<16x32xf32>
    %c0_10 = arith.constant 0 : index
    %c0_11 = arith.constant 0 : index
    %25 = vector.load %arg6[%c0_10, %c0_11] : memref<1x32xf32, #tpu.memory_space<vmem>>, vector<1x32xf32>
    %26 = vector.broadcast %25 : vector<1x32xf32> to vector<16x32xf32>
    %27 = arith.addf %24, %26 : vector<16x32xf32>
    %cst_12 = arith.constant 0.000000e+00 : f32
    %28 = vector.broadcast %cst_12 : f32 to vector<16x32xf32>
    %29 = arith.cmpf ogt, %27, %28 : vector<16x32xf32>
    %cst_13 = arith.constant 0.000000e+00 : f32
    %30 = vector.broadcast %cst_13 : f32 to vector<16x32xf32>
    %31 = arith.minimumf %27, %30 : vector<16x32xf32>
    %32 = math.exp %31 : vector<16x32xf32>
    %cst_14 = arith.constant 1.000000e+00 : f32
    %33 = vector.broadcast %cst_14 : f32 to vector<16x32xf32>
    %34 = arith.subf %32, %33 : vector<16x32xf32>
    %35 = arith.select %29, %27, %34 : vector<16x32xi1>, vector<16x32xf32>
    %36 = arith.truncf %35 : vector<16x32xf32> to vector<16x32xbf16>
    %c0_15 = arith.constant 0 : index
    %c0_16 = arith.constant 0 : index
    %37 = vector.load %arg7[%c0_15, %c0_16] : memref<32x32xbf16, #tpu.memory_space<vmem>>, vector<32x32xbf16>
    %cst_17 = arith.constant dense<0.000000e+00> : vector<16x32xf32>
    %38 = tpu.matmul %36, %37, %cst_17 {dimension_numbers = #tpu.dot_dimension_numbers<[1], [0], [0], [1], [0, 0, 1, 1], [], []>} : vector<16x32xbf16>, vector<32x32xbf16>, vector<16x32xf32> -> vector<16x32xf32>
    %c0_18 = arith.constant 0 : index
    %c0_19 = arith.constant 0 : index
    %39 = vector.load %arg8[%c0_18, %c0_19] : memref<1x32xf32, #tpu.memory_space<vmem>>, vector<1x32xf32>
    %40 = vector.broadcast %39 : vector<1x32xf32> to vector<16x32xf32>
    %41 = arith.addf %38, %40 : vector<16x32xf32>
    %42 = arith.truncf %41 : vector<16x32xf32> to vector<16x32xbf16>
    %c0_20 = arith.constant 0 : index
    %c0_21 = arith.constant 0 : index
    %43 = vector.load %arg9[%c0_20, %c0_21] : memref<32x128xbf16, #tpu.memory_space<vmem>>, vector<32x128xbf16>
    %cst_22 = arith.constant dense<0.000000e+00> : vector<16x128xf32>
    %44 = tpu.matmul %42, %43, %cst_22 {dimension_numbers = #tpu.dot_dimension_numbers<[1], [0], [0], [1], [0, 0, 1, 1], [], []>} : vector<16x32xbf16>, vector<32x128xbf16>, vector<16x128xf32> -> vector<16x128xf32>
    %45 = vector.extract_strided_slice %44 {offsets = [0, 0], sizes = [16, 64], strides = [1, 1]} : vector<16x128xf32> to vector<16x64xf32>
    %46 = vector.extract_strided_slice %44 {offsets = [0, 64], sizes = [16, 64], strides = [1, 1]} : vector<16x128xf32> to vector<16x64xf32>
    %c0_23 = arith.constant 0 : index
    %c0_24 = arith.constant 0 : index
    %47 = vector.load %arg2[%c0_23, %c0_24] : memref<16x1xf32, #tpu.memory_space<vmem>>, vector<16x1xf32>
    %c0_25 = arith.constant 0 : index
    %c0_26 = arith.constant 0 : index
    %48 = vector.load %arg11[%c0_25, %c0_26] : memref<1x64xf32, #tpu.memory_space<vmem>>, vector<1x64xf32>
    %cst_27 = arith.constant 0.000000e+00 : f32
    %49 = vector.broadcast %cst_27 : f32 to vector<16x64xf32>
    %50 = vector.broadcast %48 : vector<1x64xf32> to vector<16x64xf32>
    %51 = arith.addf %50, %49 : vector<16x64xf32>
    %cst_28 = arith.constant 0.000000e+00 : f32
    %52 = vector.broadcast %cst_28 : f32 to vector<3x64xf32>
    %53 = vector.extract_strided_slice %45 {offsets = [0, 0], sizes = [13, 64], strides = [1, 1]} : vector<16x64xf32> to vector<13x64xf32>
    %54 = tpu.concatenate %52, %53 in 0 : vector<3x64xf32>, vector<13x64xf32> -> vector<16x64xf32>
    %cst_29 = arith.constant 3.000000e+00 : f32
    %55 = vector.broadcast %cst_29 : f32 to vector<16x1xf32>
    %56 = arith.cmpf oge, %47, %55 : vector<16x1xf32>
    %57 = arith.extui %56 : vector<16x1xi1> to vector<16x1xi32>
    %58 = arith.sitofp %57 : vector<16x1xi32> to vector<16x1xf32>
    %59 = vector.broadcast %58 : vector<16x1xf32> to vector<16x64xf32>
    %60 = arith.mulf %54, %59 : vector<16x64xf32>
    %c0_30 = arith.constant 0 : index
    %c0_31 = arith.constant 0 : index
    %61 = vector.load %arg10[%c0_30, %c0_31] : memref<4x64xf32, #tpu.memory_space<vmem>>, vector<1x64xf32>
    %62 = vector.broadcast %61 : vector<1x64xf32> to vector<16x64xf32>
    %63 = arith.mulf %62, %60 : vector<16x64xf32>
    %64 = arith.addf %51, %63 : vector<16x64xf32>
    %cst_32 = arith.constant 0.000000e+00 : f32
    %65 = vector.broadcast %cst_32 : f32 to vector<2x64xf32>
    %66 = vector.extract_strided_slice %45 {offsets = [0, 0], sizes = [14, 64], strides = [1, 1]} : vector<16x64xf32> to vector<14x64xf32>
    %67 = tpu.concatenate %65, %66 in 0 : vector<2x64xf32>, vector<14x64xf32> -> vector<16x64xf32>
    %cst_33 = arith.constant 2.000000e+00 : f32
    %68 = vector.broadcast %cst_33 : f32 to vector<16x1xf32>
    %69 = arith.cmpf oge, %47, %68 : vector<16x1xf32>
    %70 = arith.extui %69 : vector<16x1xi1> to vector<16x1xi32>
    %71 = arith.sitofp %70 : vector<16x1xi32> to vector<16x1xf32>
    %72 = vector.broadcast %71 : vector<16x1xf32> to vector<16x64xf32>
    %73 = arith.mulf %67, %72 : vector<16x64xf32>
    %c1 = arith.constant 1 : index
    %c0_34 = arith.constant 0 : index
    %74 = vector.load %arg10[%c1, %c0_34] : memref<4x64xf32, #tpu.memory_space<vmem>>, vector<1x64xf32>
    %75 = vector.broadcast %74 : vector<1x64xf32> to vector<16x64xf32>
    %76 = arith.mulf %75, %73 : vector<16x64xf32>
    %77 = arith.addf %64, %76 : vector<16x64xf32>
    %cst_35 = arith.constant 0.000000e+00 : f32
    %78 = vector.broadcast %cst_35 : f32 to vector<1x64xf32>
    %79 = vector.extract_strided_slice %45 {offsets = [0, 0], sizes = [15, 64], strides = [1, 1]} : vector<16x64xf32> to vector<15x64xf32>
    %80 = tpu.concatenate %78, %79 in 0 : vector<1x64xf32>, vector<15x64xf32> -> vector<16x64xf32>
    %cst_36 = arith.constant 1.000000e+00 : f32
    %81 = vector.broadcast %cst_36 : f32 to vector<16x1xf32>
    %82 = arith.cmpf oge, %47, %81 : vector<16x1xf32>
    %83 = arith.extui %82 : vector<16x1xi1> to vector<16x1xi32>
    %84 = arith.sitofp %83 : vector<16x1xi32> to vector<16x1xf32>
    %85 = vector.broadcast %84 : vector<16x1xf32> to vector<16x64xf32>
    %86 = arith.mulf %80, %85 : vector<16x64xf32>
    %c2 = arith.constant 2 : index
    %c0_37 = arith.constant 0 : index
    %87 = vector.load %arg10[%c2, %c0_37] : memref<4x64xf32, #tpu.memory_space<vmem>>, vector<1x64xf32>
    %88 = vector.broadcast %87 : vector<1x64xf32> to vector<16x64xf32>
    %89 = arith.mulf %88, %86 : vector<16x64xf32>
    %90 = arith.addf %77, %89 : vector<16x64xf32>
    %c3 = arith.constant 3 : index
    %c0_38 = arith.constant 0 : index
    %91 = vector.load %arg10[%c3, %c0_38] : memref<4x64xf32, #tpu.memory_space<vmem>>, vector<1x64xf32>
    %92 = vector.broadcast %91 : vector<1x64xf32> to vector<16x64xf32>
    %93 = arith.mulf %92, %45 : vector<16x64xf32>
    %94 = arith.addf %90, %93 : vector<16x64xf32>
    %95 = math.absf %94 : vector<16x64xf32>
    %cst_39 = arith.constant 0.000000e+00 : f32
    %96 = vector.broadcast %cst_39 : f32 to vector<16x64xf32>
    %97 = arith.subf %96, %95 : vector<16x64xf32>
    %98 = math.exp %97 : vector<16x64xf32>
    %cst_40 = arith.constant 0.000000e+00 : f32
    %99 = vector.broadcast %cst_40 : f32 to vector<16x64xf32>
    %100 = arith.cmpf oge, %94, %99 : vector<16x64xf32>
    %cst_41 = arith.constant 1.000000e+00 : f32
    %101 = vector.broadcast %cst_41 : f32 to vector<16x64xf32>
    %102 = arith.addf %101, %98 : vector<16x64xf32>
    %cst_42 = arith.constant 1.000000e+00 : f32
    %103 = vector.broadcast %cst_42 : f32 to vector<16x64xf32>
    %104 = arith.divf %103, %102 : vector<16x64xf32>
    %cst_43 = arith.constant 1.000000e+00 : f32
    %105 = vector.broadcast %cst_43 : f32 to vector<16x64xf32>
    %106 = arith.addf %105, %98 : vector<16x64xf32>
    %107 = arith.divf %98, %106 : vector<16x64xf32>
    %108 = arith.select %100, %104, %107 : vector<16x64xi1>, vector<16x64xf32>
    %109 = arith.mulf %94, %108 : vector<16x64xf32>
    %110 = arith.truncf %109 : vector<16x64xf32> to vector<16x64xbf16>
    %c0_44 = arith.constant 0 : index
    %c0_45 = arith.constant 0 : index
    %111 = vector.load %arg12[%c0_44, %c0_45] : memref<64x34xbf16, #tpu.memory_space<vmem>>, vector<64x34xbf16>
    %cst_46 = arith.constant dense<0.000000e+00> : vector<16x34xf32>
    %112 = tpu.matmul %110, %111, %cst_46 {dimension_numbers = #tpu.dot_dimension_numbers<[1], [0], [0], [1], [0, 0, 1, 1], [], []>} : vector<16x64xbf16>, vector<64x34xbf16>, vector<16x34xf32> -> vector<16x34xf32>
    %113 = vector.extract_strided_slice %112 {offsets = [0, 0], sizes = [16, 2], strides = [1, 1]} : vector<16x34xf32> to vector<16x2xf32>
    %114 = vector.extract_strided_slice %112 {offsets = [0, 2], sizes = [16, 16], strides = [1, 1]} : vector<16x34xf32> to vector<16x16xf32>
    %115 = vector.extract_strided_slice %112 {offsets = [0, 18], sizes = [16, 16], strides = [1, 1]} : vector<16x34xf32> to vector<16x16xf32>
    %cst_47 = arith.constant 0.000000e+00 : f32
    %116 = vector.broadcast %cst_47 : f32 to vector<16x64xf32>
    %c0_48 = arith.constant 0 : index
    %c0_49 = arith.constant 0 : index
    %117 = vector.load %arg14[%c0_48, %c0_49] : memref<1x64xf32, #tpu.memory_space<vmem>>, vector<1x64xf32>
    %118 = vector.broadcast %117 : vector<1x64xf32> to vector<16x64xf32>
    %119 = arith.addf %116, %118 : vector<16x64xf32>
    %120 = vector.extract_strided_slice %113 {offsets = [0, 0], sizes = [16, 1], strides = [1, 1]} : vector<16x2xf32> to vector<16x1xf32>
    %c0_50 = arith.constant 0 : index
    %c0_51 = arith.constant 0 : index
    %121 = vector.load %arg13[%c0_50, %c0_51] : memref<2x64xf32, #tpu.memory_space<vmem>>, vector<1x64xf32>
    %122 = vector.broadcast %120 : vector<16x1xf32> to vector<16x64xf32>
    %123 = vector.broadcast %121 : vector<1x64xf32> to vector<16x64xf32>
    %124 = arith.mulf %122, %123 : vector<16x64xf32>
    %125 = arith.addf %119, %124 : vector<16x64xf32>
    %126 = vector.extract_strided_slice %113 {offsets = [0, 1], sizes = [16, 1], strides = [1, 1]} : vector<16x2xf32> to vector<16x1xf32>
    %c1_52 = arith.constant 1 : index
    %c0_53 = arith.constant 0 : index
    %127 = vector.load %arg13[%c1_52, %c0_53] : memref<2x64xf32, #tpu.memory_space<vmem>>, vector<1x64xf32>
    %128 = vector.broadcast %126 : vector<16x1xf32> to vector<16x64xf32>
    %129 = vector.broadcast %127 : vector<1x64xf32> to vector<16x64xf32>
    %130 = arith.mulf %128, %129 : vector<16x64xf32>
    %131 = arith.addf %125, %130 : vector<16x64xf32>
    %cst_54 = arith.constant 0.000000e+00 : f32
    %132 = vector.broadcast %cst_54 : f32 to vector<16x64xf32>
    %133 = arith.maximumf %131, %132 : vector<16x64xf32>
    %134 = math.absf %131 : vector<16x64xf32>
    %cst_55 = arith.constant 0.000000e+00 : f32
    %135 = vector.broadcast %cst_55 : f32 to vector<16x64xf32>
    %136 = arith.subf %135, %134 : vector<16x64xf32>
    %137 = math.exp %136 : vector<16x64xf32>
    %cst_56 = arith.constant 1.000000e+00 : f32
    %138 = vector.broadcast %cst_56 : f32 to vector<16x64xf32>
    %139 = arith.addf %138, %137 : vector<16x64xf32>
    %140 = math.log %139 : vector<16x64xf32>
    %141 = arith.addf %133, %140 : vector<16x64xf32>
    %c0_57 = arith.constant 0 : index
    %c0_58 = arith.constant 0 : index
    %142 = vector.load %arg15[%c0_57, %c0_58] : memref<16x64xf32, #tpu.memory_space<vmem>>, vector<16x64xf32>
    %143 = math.exp %142 : vector<16x64xf32>
    %cst_59 = arith.constant 0.000000e+00 : f32
    %144 = vector.broadcast %cst_59 : f32 to vector<16x64xf32>
    %145 = arith.subf %144, %143 : vector<16x64xf32>
    %146 = arith.mulf %141, %109 : vector<16x64xf32>
    %147 = vector.extract_strided_slice %141 {offsets = [0, 0], sizes = [8, 64], strides = [1, 1]} : vector<16x64xf32> to vector<8x64xf32>
    %148 = vector.shape_cast %147 : vector<8x64xf32> to vector<8x1x64xf32>
    %149 = vector.shape_cast %145 : vector<16x64xf32> to vector<1x16x64xf32>
    %150 = vector.broadcast %148 : vector<8x1x64xf32> to vector<8x16x64xf32>
    %151 = vector.broadcast %149 : vector<1x16x64xf32> to vector<8x16x64xf32>
    %152 = arith.mulf %150, %151 : vector<8x16x64xf32>
    %153 = math.exp %152 : vector<8x16x64xf32>
    %c0_60 = arith.constant 0 : index
    %c0_61 = arith.constant 0 : index
    %c0_62 = arith.constant 0 : index
    %154 = vector.load %arg20[%c0_60, %c0_61, %c0_62] : memref<8x16x128xf32, #tpu.memory_space<vmem>>, vector<8x16x64xf32>
    tpu.vector_store %arg20[%c0_60, %c0_61, %c0_62], %153 {strides = array<i32>} : memref<8x16x128xf32, #tpu.memory_space<vmem>>, vector<8x16x64xf32>,
    %155 = vector.extract_strided_slice %114 {offsets = [0, 0], sizes = [8, 16], strides = [1, 1]} : vector<16x16xf32> to vector<8x16xf32>
    %156 = vector.shape_cast %155 : vector<8x16xf32> to vector<8x16x1xf32>
    %157 = vector.extract_strided_slice %146 {offsets = [0, 0], sizes = [8, 64], strides = [1, 1]} : vector<16x64xf32> to vector<8x64xf32>
    %158 = vector.shape_cast %157 : vector<8x64xf32> to vector<8x1x64xf32>
    %159 = vector.broadcast %156 : vector<8x16x1xf32> to vector<8x16x64xf32>
    %160 = vector.broadcast %158 : vector<8x1x64xf32> to vector<8x16x64xf32>
    %161 = arith.mulf %159, %160 : vector<8x16x64xf32>
    %c0_63 = arith.constant 0 : index
    %c0_64 = arith.constant 0 : index
    %c0_65 = arith.constant 0 : index
    %162 = vector.load %arg21[%c0_63, %c0_64, %c0_65] : memref<8x16x128xf32, #tpu.memory_space<vmem>>, vector<8x16x64xf32>
    tpu.vector_store %arg21[%c0_63, %c0_64, %c0_65], %161 {strides = array<i32>} : memref<8x16x128xf32, #tpu.memory_space<vmem>>, vector<8x16x64xf32>,
    %163 = vector.extract_strided_slice %115 {offsets = [0, 0], sizes = [8, 16], strides = [1, 1]} : vector<16x16xf32> to vector<8x16xf32>
    %164 = vector.shape_cast %163 : vector<8x16xf32> to vector<8x16x1xf32>
    %165 = vector.shape_cast %164 : vector<8x16x1xf32> to vector<8x16x1xf32>
    %166 = vector.broadcast %165 : vector<8x16x1xf32> to vector<8x16x64xf32>
    %c0_66 = arith.constant 0 : index
    %c0_67 = arith.constant 0 : index
    %c0_68 = arith.constant 0 : index
    %167 = vector.load %arg22[%c0_66, %c0_67, %c0_68] : memref<8x16x128xf32, #tpu.memory_space<vmem>>, vector<8x16x64xf32>
    tpu.vector_store %arg22[%c0_66, %c0_67, %c0_68], %166 {strides = array<i32>} : memref<8x16x128xf32, #tpu.memory_space<vmem>>, vector<8x16x64xf32>,
    %168 = vector.extract_strided_slice %141 {offsets = [8, 0], sizes = [8, 64], strides = [1, 1]} : vector<16x64xf32> to vector<8x64xf32>
    %169 = vector.shape_cast %168 : vector<8x64xf32> to vector<8x1x64xf32>
    %170 = vector.shape_cast %145 : vector<16x64xf32> to vector<1x16x64xf32>
    %171 = vector.broadcast %169 : vector<8x1x64xf32> to vector<8x16x64xf32>
    %172 = vector.broadcast %170 : vector<1x16x64xf32> to vector<8x16x64xf32>
    %173 = arith.mulf %171, %172 : vector<8x16x64xf32>
    %174 = math.exp %173 : vector<8x16x64xf32>
    %c0_69 = arith.constant 0 : index
    %c0_70 = arith.constant 0 : index
    %c64 = arith.constant 64 : index
    %175 = vector.load %arg20[%c0_69, %c0_70, %c64] : memref<8x16x128xf32, #tpu.memory_space<vmem>>, vector<8x16x64xf32>
    tpu.vector_store %arg20[%c0_69, %c0_70, %c64], %174 {strides = array<i32>} : memref<8x16x128xf32, #tpu.memory_space<vmem>>, vector<8x16x64xf32>,
    %176 = vector.extract_strided_slice %114 {offsets = [8, 0], sizes = [8, 16], strides = [1, 1]} : vector<16x16xf32> to vector<8x16xf32>
    %177 = vector.shape_cast %176 : vector<8x16xf32> to vector<8x16x1xf32>
    %178 = vector.extract_strided_slice %146 {offsets = [8, 0], sizes = [8, 64], strides = [1, 1]} : vector<16x64xf32> to vector<8x64xf32>
    %179 = vector.shape_cast %178 : vector<8x64xf32> to vector<8x1x64xf32>
    %180 = vector.broadcast %177 : vector<8x16x1xf32> to vector<8x16x64xf32>
    %181 = vector.broadcast %179 : vector<8x1x64xf32> to vector<8x16x64xf32>
    %182 = arith.mulf %180, %181 : vector<8x16x64xf32>
    %c0_71 = arith.constant 0 : index
    %c0_72 = arith.constant 0 : index
    %c64_73 = arith.constant 64 : index
    %183 = vector.load %arg21[%c0_71, %c0_72, %c64_73] : memref<8x16x128xf32, #tpu.memory_space<vmem>>, vector<8x16x64xf32>
    tpu.vector_store %arg21[%c0_71, %c0_72, %c64_73], %182 {strides = array<i32>} : memref<8x16x128xf32, #tpu.memory_space<vmem>>, vector<8x16x64xf32>,
    %184 = vector.extract_strided_slice %115 {offsets = [8, 0], sizes = [8, 16], strides = [1, 1]} : vector<16x16xf32> to vector<8x16xf32>
    %185 = vector.shape_cast %184 : vector<8x16xf32> to vector<8x16x1xf32>
    %186 = vector.shape_cast %185 : vector<8x16x1xf32> to vector<8x16x1xf32>
    %187 = vector.broadcast %186 : vector<8x16x1xf32> to vector<8x16x64xf32>
    %c0_74 = arith.constant 0 : index
    %c0_75 = arith.constant 0 : index
    %c64_76 = arith.constant 64 : index
    %188 = vector.load %arg22[%c0_74, %c0_75, %c64_76] : memref<8x16x128xf32, #tpu.memory_space<vmem>>, vector<8x16x64xf32>
    tpu.vector_store %arg22[%c0_74, %c0_75, %c64_76], %187 {strides = array<i32>} : memref<8x16x128xf32, #tpu.memory_space<vmem>>, vector<8x16x64xf32>,
    %cst_77 = arith.constant 0.000000e+00 : f32
    %189 = vector.broadcast %cst_77 : f32 to vector<16x128xf32>
    %c0_i32 = arith.constant 0 : i32
    %190 = arith.index_cast %c0_i32 : i32 to index
    %c0_78 = arith.constant 0 : index
    %c0_79 = arith.constant 0 : index
    %191 = vector.load %arg20[%190, %c0_78, %c0_79] : memref<8x16x128xf32, #tpu.memory_space<vmem>>, vector<1x16x128xf32>
    %192 = vector.shape_cast %191 : vector<1x16x128xf32> to vector<16x128xf32>
    %193 = arith.mulf %192, %189 : vector<16x128xf32>
    %194 = arith.index_cast %c0_i32 : i32 to index
    %c0_80 = arith.constant 0 : index
    %c0_81 = arith.constant 0 : index
    %195 = vector.load %arg21[%194, %c0_80, %c0_81] : memref<8x16x128xf32, #tpu.memory_space<vmem>>, vector<1x16x128xf32>
    %196 = vector.shape_cast %195 : vector<1x16x128xf32> to vector<16x128xf32>
    %197 = arith.addf %193, %196 : vector<16x128xf32>
    %198 = arith.index_cast %c0_i32 : i32 to index
    %c0_82 = arith.constant 0 : index
    %c0_83 = arith.constant 0 : index
    %199 = vector.load %arg22[%198, %c0_82, %c0_83] : memref<8x16x128xf32, #tpu.memory_space<vmem>>, vector<1x16x128xf32>
    %200 = vector.shape_cast %199 : vector<1x16x128xf32> to vector<16x128xf32>
    %201 = arith.mulf %200, %197 : vector<16x128xf32>
    %cst_84 = arith.constant dense<0.000000e+00> : vector<128xf32>
    %202 = vector.multi_reduction <add>, %201, %cst_84 [0] : vector<16x128xf32> to vector<128xf32>
    %203 = vector.shape_cast %202 : vector<128xf32> to vector<1x128xf32>
    %204 = arith.index_cast %c0_i32 : i32 to index
    %c0_85 = arith.constant 0 : index
    %205 = vector.load %arg23[%204, %c0_85] : memref<8x128xf32, #tpu.memory_space<vmem>>, vector<1x128xf32>
    tpu.vector_store %arg23[%204, %c0_85], %203 {strides = array<i32>} : memref<8x128xf32, #tpu.memory_space<vmem>>, vector<1x128xf32>,
    %c1_i32 = arith.constant 1 : i32
    %206 = arith.index_cast %c1_i32 : i32 to index
    %c0_86 = arith.constant 0 : index
    %c0_87 = arith.constant 0 : index
    %207 = vector.load %arg20[%206, %c0_86, %c0_87] : memref<8x16x128xf32, #tpu.memory_space<vmem>>, vector<1x16x128xf32>
    %208 = vector.shape_cast %207 : vector<1x16x128xf32> to vector<16x128xf32>
    %209 = arith.mulf %208, %197 : vector<16x128xf32>
    %210 = arith.index_cast %c1_i32 : i32 to index
    %c0_88 = arith.constant 0 : index
    %c0_89 = arith.constant 0 : index
    %211 = vector.load %arg21[%210, %c0_88, %c0_89] : memref<8x16x128xf32, #tpu.memory_space<vmem>>, vector<1x16x128xf32>
    %212 = vector.shape_cast %211 : vector<1x16x128xf32> to vector<16x128xf32>
    %213 = arith.addf %209, %212 : vector<16x128xf32>
    %214 = arith.index_cast %c1_i32 : i32 to index
    %c0_90 = arith.constant 0 : index
    %c0_91 = arith.constant 0 : index
    %215 = vector.load %arg22[%214, %c0_90, %c0_91] : memref<8x16x128xf32, #tpu.memory_space<vmem>>, vector<1x16x128xf32>
    %216 = vector.shape_cast %215 : vector<1x16x128xf32> to vector<16x128xf32>
    %217 = arith.mulf %216, %213 : vector<16x128xf32>
    %cst_92 = arith.constant dense<0.000000e+00> : vector<128xf32>
    %218 = vector.multi_reduction <add>, %217, %cst_92 [0] : vector<16x128xf32> to vector<128xf32>
    %219 = vector.shape_cast %218 : vector<128xf32> to vector<1x128xf32>
    %220 = arith.index_cast %c1_i32 : i32 to index
    %c0_93 = arith.constant 0 : index
    %221 = vector.load %arg23[%220, %c0_93] : memref<8x128xf32, #tpu.memory_space<vmem>>, vector<1x128xf32>
    tpu.vector_store %arg23[%220, %c0_93], %219 {strides = array<i32>} : memref<8x128xf32, #tpu.memory_space<vmem>>, vector<1x128xf32>,
    %c2_i32 = arith.constant 2 : i32
    %222 = arith.index_cast %c2_i32 : i32 to index
    %c0_94 = arith.constant 0 : index
    %c0_95 = arith.constant 0 : index
    %223 = vector.load %arg20[%222, %c0_94, %c0_95] : memref<8x16x128xf32, #tpu.memory_space<vmem>>, vector<1x16x128xf32>
    %224 = vector.shape_cast %223 : vector<1x16x128xf32> to vector<16x128xf32>
    %225 = arith.mulf %224, %213 : vector<16x128xf32>
    %226 = arith.index_cast %c2_i32 : i32 to index
    %c0_96 = arith.constant 0 : index
    %c0_97 = arith.constant 0 : index
    %227 = vector.load %arg21[%226, %c0_96, %c0_97] : memref<8x16x128xf32, #tpu.memory_space<vmem>>, vector<1x16x128xf32>
    %228 = vector.shape_cast %227 : vector<1x16x128xf32> to vector<16x128xf32>
    %229 = arith.addf %225, %228 : vector<16x128xf32>
    %230 = arith.index_cast %c2_i32 : i32 to index
    %c0_98 = arith.constant 0 : index
    %c0_99 = arith.constant 0 : index
    %231 = vector.load %arg22[%230, %c0_98, %c0_99] : memref<8x16x128xf32, #tpu.memory_space<vmem>>, vector<1x16x128xf32>
    %232 = vector.shape_cast %231 : vector<1x16x128xf32> to vector<16x128xf32>
    %233 = arith.mulf %232, %229 : vector<16x128xf32>
    %cst_100 = arith.constant dense<0.000000e+00> : vector<128xf32>
    %234 = vector.multi_reduction <add>, %233, %cst_100 [0] : vector<16x128xf32> to vector<128xf32>
    %235 = vector.shape_cast %234 : vector<128xf32> to vector<1x128xf32>
    %236 = arith.index_cast %c2_i32 : i32 to index
    %c0_101 = arith.constant 0 : index
    %237 = vector.load %arg23[%236, %c0_101] : memref<8x128xf32, #tpu.memory_space<vmem>>, vector<1x128xf32>
    tpu.vector_store %arg23[%236, %c0_101], %235 {strides = array<i32>} : memref<8x128xf32, #tpu.memory_space<vmem>>, vector<1x128xf32>,
    %c3_i32 = arith.constant 3 : i32
    %238 = arith.index_cast %c3_i32 : i32 to index
    %c0_102 = arith.constant 0 : index
    %c0_103 = arith.constant 0 : index
    %239 = vector.load %arg20[%238, %c0_102, %c0_103] : memref<8x16x128xf32, #tpu.memory_space<vmem>>, vector<1x16x128xf32>
    %240 = vector.shape_cast %239 : vector<1x16x128xf32> to vector<16x128xf32>
    %241 = arith.mulf %240, %229 : vector<16x128xf32>
    %242 = arith.index_cast %c3_i32 : i32 to index
    %c0_104 = arith.constant 0 : index
    %c0_105 = arith.constant 0 : index
    %243 = vector.load %arg21[%242, %c0_104, %c0_105] : memref<8x16x128xf32, #tpu.memory_space<vmem>>, vector<1x16x128xf32>
    %244 = vector.shape_cast %243 : vector<1x16x128xf32> to vector<16x128xf32>
    %245 = arith.addf %241, %244 : vector<16x128xf32>
    %246 = arith.index_cast %c3_i32 : i32 to index
    %c0_106 = arith.constant 0 : index
    %c0_107 = arith.constant 0 : index
    %247 = vector.load %arg22[%246, %c0_106, %c0_107] : memref<8x16x128xf32, #tpu.memory_space<vmem>>, vector<1x16x128xf32>
    %248 = vector.shape_cast %247 : vector<1x16x128xf32> to vector<16x128xf32>
    %249 = arith.mulf %248, %245 : vector<16x128xf32>
    %cst_108 = arith.constant dense<0.000000e+00> : vector<128xf32>
    %250 = vector.multi_reduction <add>, %249, %cst_108 [0] : vector<16x128xf32> to vector<128xf32>
    %251 = vector.shape_cast %250 : vector<128xf32> to vector<1x128xf32>
    %252 = arith.index_cast %c3_i32 : i32 to index
    %c0_109 = arith.constant 0 : index
    %253 = vector.load %arg23[%252, %c0_109] : memref<8x128xf32, #tpu.memory_space<vmem>>, vector<1x128xf32>
    tpu.vector_store %arg23[%252, %c0_109], %251 {strides = array<i32>} : memref<8x128xf32, #tpu.memory_space<vmem>>, vector<1x128xf32>,
    %c4_i32 = arith.constant 4 : i32
    %254 = arith.index_cast %c4_i32 : i32 to index
    %c0_110 = arith.constant 0 : index
    %c0_111 = arith.constant 0 : index
    %255 = vector.load %arg20[%254, %c0_110, %c0_111] : memref<8x16x128xf32, #tpu.memory_space<vmem>>, vector<1x16x128xf32>
    %256 = vector.shape_cast %255 : vector<1x16x128xf32> to vector<16x128xf32>
    %257 = arith.mulf %256, %245 : vector<16x128xf32>
    %258 = arith.index_cast %c4_i32 : i32 to index
    %c0_112 = arith.constant 0 : index
    %c0_113 = arith.constant 0 : index
    %259 = vector.load %arg21[%258, %c0_112, %c0_113] : memref<8x16x128xf32, #tpu.memory_space<vmem>>, vector<1x16x128xf32>
    %260 = vector.shape_cast %259 : vector<1x16x128xf32> to vector<16x128xf32>
    %261 = arith.addf %257, %260 : vector<16x128xf32>
    %262 = arith.index_cast %c4_i32 : i32 to index
    %c0_114 = arith.constant 0 : index
    %c0_115 = arith.constant 0 : index
    %263 = vector.load %arg22[%262, %c0_114, %c0_115] : memref<8x16x128xf32, #tpu.memory_space<vmem>>, vector<1x16x128xf32>
    %264 = vector.shape_cast %263 : vector<1x16x128xf32> to vector<16x128xf32>
    %265 = arith.mulf %264, %261 : vector<16x128xf32>
    %cst_116 = arith.constant dense<0.000000e+00> : vector<128xf32>
    %266 = vector.multi_reduction <add>, %265, %cst_116 [0] : vector<16x128xf32> to vector<128xf32>
    %267 = vector.shape_cast %266 : vector<128xf32> to vector<1x128xf32>
    %268 = arith.index_cast %c4_i32 : i32 to index
    %c0_117 = arith.constant 0 : index
    %269 = vector.load %arg23[%268, %c0_117] : memref<8x128xf32, #tpu.memory_space<vmem>>, vector<1x128xf32>
    tpu.vector_store %arg23[%268, %c0_117], %267 {strides = array<i32>} : memref<8x128xf32, #tpu.memory_space<vmem>>, vector<1x128xf32>,
    %c5_i32 = arith.constant 5 : i32
    %270 = arith.index_cast %c5_i32 : i32 to index
    %c0_118 = arith.constant 0 : index
    %c0_119 = arith.constant 0 : index
    %271 = vector.load %arg20[%270, %c0_118, %c0_119] : memref<8x16x128xf32, #tpu.memory_space<vmem>>, vector<1x16x128xf32>
    %272 = vector.shape_cast %271 : vector<1x16x128xf32> to vector<16x128xf32>
    %273 = arith.mulf %272, %261 : vector<16x128xf32>
    %274 = arith.index_cast %c5_i32 : i32 to index
    %c0_120 = arith.constant 0 : index
    %c0_121 = arith.constant 0 : index
    %275 = vector.load %arg21[%274, %c0_120, %c0_121] : memref<8x16x128xf32, #tpu.memory_space<vmem>>, vector<1x16x128xf32>
    %276 = vector.shape_cast %275 : vector<1x16x128xf32> to vector<16x128xf32>
    %277 = arith.addf %273, %276 : vector<16x128xf32>
    %278 = arith.index_cast %c5_i32 : i32 to index
    %c0_122 = arith.constant 0 : index
    %c0_123 = arith.constant 0 : index
    %279 = vector.load %arg22[%278, %c0_122, %c0_123] : memref<8x16x128xf32, #tpu.memory_space<vmem>>, vector<1x16x128xf32>
    %280 = vector.shape_cast %279 : vector<1x16x128xf32> to vector<16x128xf32>
    %281 = arith.mulf %280, %277 : vector<16x128xf32>
    %cst_124 = arith.constant dense<0.000000e+00> : vector<128xf32>
    %282 = vector.multi_reduction <add>, %281, %cst_124 [0] : vector<16x128xf32> to vector<128xf32>
    %283 = vector.shape_cast %282 : vector<128xf32> to vector<1x128xf32>
    %284 = arith.index_cast %c5_i32 : i32 to index
    %c0_125 = arith.constant 0 : index
    %285 = vector.load %arg23[%284, %c0_125] : memref<8x128xf32, #tpu.memory_space<vmem>>, vector<1x128xf32>
    tpu.vector_store %arg23[%284, %c0_125], %283 {strides = array<i32>} : memref<8x128xf32, #tpu.memory_space<vmem>>, vector<1x128xf32>,
    %c6_i32 = arith.constant 6 : i32
    %286 = arith.index_cast %c6_i32 : i32 to index
    %c0_126 = arith.constant 0 : index
    %c0_127 = arith.constant 0 : index
    %287 = vector.load %arg20[%286, %c0_126, %c0_127] : memref<8x16x128xf32, #tpu.memory_space<vmem>>, vector<1x16x128xf32>
    %288 = vector.shape_cast %287 : vector<1x16x128xf32> to vector<16x128xf32>
    %289 = arith.mulf %288, %277 : vector<16x128xf32>
    %290 = arith.index_cast %c6_i32 : i32 to index
    %c0_128 = arith.constant 0 : index
    %c0_129 = arith.constant 0 : index
    %291 = vector.load %arg21[%290, %c0_128, %c0_129] : memref<8x16x128xf32, #tpu.memory_space<vmem>>, vector<1x16x128xf32>
    %292 = vector.shape_cast %291 : vector<1x16x128xf32> to vector<16x128xf32>
    %293 = arith.addf %289, %292 : vector<16x128xf32>
    %294 = arith.index_cast %c6_i32 : i32 to index
    %c0_130 = arith.constant 0 : index
    %c0_131 = arith.constant 0 : index
    %295 = vector.load %arg22[%294, %c0_130, %c0_131] : memref<8x16x128xf32, #tpu.memory_space<vmem>>, vector<1x16x128xf32>
    %296 = vector.shape_cast %295 : vector<1x16x128xf32> to vector<16x128xf32>
    %297 = arith.mulf %296, %293 : vector<16x128xf32>
    %cst_132 = arith.constant dense<0.000000e+00> : vector<128xf32>
    %298 = vector.multi_reduction <add>, %297, %cst_132 [0] : vector<16x128xf32> to vector<128xf32>
    %299 = vector.shape_cast %298 : vector<128xf32> to vector<1x128xf32>
    %300 = arith.index_cast %c6_i32 : i32 to index
    %c0_133 = arith.constant 0 : index
    %301 = vector.load %arg23[%300, %c0_133] : memref<8x128xf32, #tpu.memory_space<vmem>>, vector<1x128xf32>
    tpu.vector_store %arg23[%300, %c0_133], %299 {strides = array<i32>} : memref<8x128xf32, #tpu.memory_space<vmem>>, vector<1x128xf32>,
    %c7_i32 = arith.constant 7 : i32
    %302 = arith.index_cast %c7_i32 : i32 to index
    %c0_134 = arith.constant 0 : index
    %c0_135 = arith.constant 0 : index
    %303 = vector.load %arg20[%302, %c0_134, %c0_135] : memref<8x16x128xf32, #tpu.memory_space<vmem>>, vector<1x16x128xf32>
    %304 = vector.shape_cast %303 : vector<1x16x128xf32> to vector<16x128xf32>
    %305 = arith.mulf %304, %293 : vector<16x128xf32>
    %306 = arith.index_cast %c7_i32 : i32 to index
    %c0_136 = arith.constant 0 : index
    %c0_137 = arith.constant 0 : index
    %307 = vector.load %arg21[%306, %c0_136, %c0_137] : memref<8x16x128xf32, #tpu.memory_space<vmem>>, vector<1x16x128xf32>
    %308 = vector.shape_cast %307 : vector<1x16x128xf32> to vector<16x128xf32>
    %309 = arith.addf %305, %308 : vector<16x128xf32>
    %310 = arith.index_cast %c7_i32 : i32 to index
    %c0_138 = arith.constant 0 : index
    %c0_139 = arith.constant 0 : index
    %311 = vector.load %arg22[%310, %c0_138, %c0_139] : memref<8x16x128xf32, #tpu.memory_space<vmem>>, vector<1x16x128xf32>
    %312 = vector.shape_cast %311 : vector<1x16x128xf32> to vector<16x128xf32>
    %313 = arith.mulf %312, %309 : vector<16x128xf32>
    %cst_140 = arith.constant dense<0.000000e+00> : vector<128xf32>
    %314 = vector.multi_reduction <add>, %313, %cst_140 [0] : vector<16x128xf32> to vector<128xf32>
    %315 = vector.shape_cast %314 : vector<128xf32> to vector<1x128xf32>
    %316 = arith.index_cast %c7_i32 : i32 to index
    %c0_141 = arith.constant 0 : index
    %317 = vector.load %arg23[%316, %c0_141] : memref<8x128xf32, #tpu.memory_space<vmem>>, vector<1x128xf32>
    tpu.vector_store %arg23[%316, %c0_141], %315 {strides = array<i32>} : memref<8x128xf32, #tpu.memory_space<vmem>>, vector<1x128xf32>,
    %c8_i32 = arith.constant 8 : i32
    %c0_142 = arith.constant 0 : index
    %c0_143 = arith.constant 0 : index
    %318 = vector.load %arg23[%c0_142, %c0_143] : memref<8x128xf32, #tpu.memory_space<vmem>>, vector<8x64xf32>
    %c0_144 = arith.constant 0 : index
    %c64_145 = arith.constant 64 : index
    %319 = vector.load %arg23[%c0_144, %c64_145] : memref<8x128xf32, #tpu.memory_space<vmem>>, vector<8x64xf32>
    %320 = tpu.concatenate %318, %319 in 0 : vector<8x64xf32>, vector<8x64xf32> -> vector<16x64xf32>
    %c0_146 = arith.constant 0 : index
    %c0_147 = arith.constant 0 : index
    %321 = vector.load %arg16[%c0_146, %c0_147] : memref<1x64xf32, #tpu.memory_space<vmem>>, vector<1x64xf32>
    %322 = vector.broadcast %321 : vector<1x64xf32> to vector<16x64xf32>
    %323 = arith.mulf %322, %109 : vector<16x64xf32>
    %324 = arith.addf %320, %323 : vector<16x64xf32>
    %325 = math.absf %46 : vector<16x64xf32>
    %cst_148 = arith.constant 0.000000e+00 : f32
    %326 = vector.broadcast %cst_148 : f32 to vector<16x64xf32>
    %327 = arith.subf %326, %325 : vector<16x64xf32>
    %328 = math.exp %327 : vector<16x64xf32>
    %cst_149 = arith.constant 0.000000e+00 : f32
    %329 = vector.broadcast %cst_149 : f32 to vector<16x64xf32>
    %330 = arith.cmpf oge, %46, %329 : vector<16x64xf32>
    %cst_150 = arith.constant 1.000000e+00 : f32
    %331 = vector.broadcast %cst_150 : f32 to vector<16x64xf32>
    %332 = arith.addf %331, %328 : vector<16x64xf32>
    %cst_151 = arith.constant 1.000000e+00 : f32
    %333 = vector.broadcast %cst_151 : f32 to vector<16x64xf32>
    %334 = arith.divf %333, %332 : vector<16x64xf32>
    %cst_152 = arith.constant 1.000000e+00 : f32
    %335 = vector.broadcast %cst_152 : f32 to vector<16x64xf32>
    %336 = arith.addf %335, %328 : vector<16x64xf32>
    %337 = arith.divf %328, %336 : vector<16x64xf32>
    %338 = arith.select %330, %334, %337 : vector<16x64xi1>, vector<16x64xf32>
    %339 = arith.mulf %46, %338 : vector<16x64xf32>
    %340 = arith.mulf %324, %339 : vector<16x64xf32>
    %341 = arith.truncf %340 : vector<16x64xf32> to vector<16x64xbf16>
    %c0_153 = arith.constant 0 : index
    %c0_154 = arith.constant 0 : index
    %342 = vector.load %arg17[%c0_153, %c0_154] : memref<64x128xbf16, #tpu.memory_space<vmem>>, vector<64x128xbf16>
    %cst_155 = arith.constant dense<0.000000e+00> : vector<16x128xf32>
    %343 = tpu.matmul %341, %342, %cst_155 {dimension_numbers = #tpu.dot_dimension_numbers<[1], [0], [0], [1], [0, 0, 1, 1], [], []>} : vector<16x64xbf16>, vector<64x128xbf16>, vector<16x128xf32> -> vector<16x128xf32>
    %c0_156 = arith.constant 0 : index
    %c0_157 = arith.constant 0 : index
    %344 = vector.load %arg18[%c0_156, %c0_157] : memref<1x128xf32, #tpu.memory_space<vmem>>, vector<1x128xf32>
    %345 = vector.broadcast %344 : vector<1x128xf32> to vector<16x128xf32>
    %346 = arith.addf %343, %345 : vector<16x128xf32>
    %c0_158 = arith.constant 0 : index
    %c0_159 = arith.constant 0 : index
    %347 = vector.load %arg19[%c0_158, %c0_159] : memref<16x128xf32, #tpu.memory_space<vmem>>, vector<16x128xf32>
    tpu.vector_store %arg19[%c0_158, %c0_159], %346 {strides = array<i32>} : memref<16x128xf32, #tpu.memory_space<vmem>>, vector<16x128xf32>,
    return
  }
  func.func @transform_0(%arg0: i32) -> (i32, i32) {
    %c0_i32 = arith.constant 0 : i32
    %c0_i32_0 = arith.constant 0 : i32
    %c0_i32_1 = arith.constant 0 : i32
    return %c0_i32, %c0_i32_0 : i32, i32
  }
  func.func @transform_1(%arg0: i32) -> (i32, i32) {
    %c0_i32 = arith.constant 0 : i32
    %c0_i32_0 = arith.constant 0 : i32
    %c0_i32_1 = arith.constant 0 : i32
    return %c0_i32, %c0_i32_0 : i32, i32
  }
  func.func @transform_2(%arg0: i32) -> (i32, i32) {
    %c0_i32 = arith.constant 0 : i32
    %c0_i32_0 = arith.constant 0 : i32
    %c0_i32_1 = arith.constant 0 : i32
    return %c0_i32, %c0_i32_0 : i32, i32
  }
  func.func @transform_3(%arg0: i32) -> (i32, i32) {
    %c0_i32 = arith.constant 0 : i32
    %c0_i32_0 = arith.constant 0 : i32
    %c0_i32_1 = arith.constant 0 : i32
    return %c0_i32, %c0_i32_0 : i32, i32
  }
  func.func @transform_4(%arg0: i32) -> (i32, i32) {
    %c0_i32 = arith.constant 0 : i32
    %c0_i32_0 = arith.constant 0 : i32
    %c0_i32_1 = arith.constant 0 : i32
    return %c0_i32, %c0_i32_0 : i32, i32
  }
  func.func @transform_5(%arg0: i32) -> (i32, i32) {
    %c0_i32 = arith.constant 0 : i32
    %c0_i32_0 = arith.constant 0 : i32
    %c0_i32_1 = arith.constant 0 : i32
    return %c0_i32, %c0_i32_0 : i32, i32
  }
  func.func @transform_6(%arg0: i32) -> (i32, i32) {
    %c0_i32 = arith.constant 0 : i32
    %c0_i32_0 = arith.constant 0 : i32
    %c0_i32_1 = arith.constant 0 : i32
    return %c0_i32, %c0_i32_0 : i32, i32
  }
  func.func @transform_7(%arg0: i32) -> (i32, i32) {
    %c0_i32 = arith.constant 0 : i32
    %c0_i32_0 = arith.constant 0 : i32
    %c0_i32_1 = arith.constant 0 : i32
    return %c0_i32, %c0_i32_0 : i32, i32
  }
  func.func @transform_8(%arg0: i32) -> (i32, i32) {
    %c0_i32 = arith.constant 0 : i32
    %c0_i32_0 = arith.constant 0 : i32
    %c0_i32_1 = arith.constant 0 : i32
    return %c0_i32, %c0_i32_0 : i32, i32
  }
  func.func @transform_9(%arg0: i32) -> (i32, i32) {
    %c0_i32 = arith.constant 0 : i32
    %c0_i32_0 = arith.constant 0 : i32
    %c0_i32_1 = arith.constant 0 : i32
    return %c0_i32, %c0_i32_0 : i32, i32
  }
  func.func @transform_10(%arg0: i32) -> (i32, i32) {
    %c0_i32 = arith.constant 0 : i32
    %c0_i32_0 = arith.constant 0 : i32
    %c0_i32_1 = arith.constant 0 : i32
    return %c0_i32, %c0_i32_0 : i32, i32
  }
  func.func @transform_11(%arg0: i32) -> (i32, i32) {
    %c0_i32 = arith.constant 0 : i32
    %c0_i32_0 = arith.constant 0 : i32
    %c0_i32_1 = arith.constant 0 : i32
    return %c0_i32, %c0_i32_0 : i32, i32
  }
  func.func @transform_12(%arg0: i32) -> (i32, i32) {
    %c0_i32 = arith.constant 0 : i32
    %c0_i32_0 = arith.constant 0 : i32
    %c0_i32_1 = arith.constant 0 : i32
    return %c0_i32, %c0_i32_0 : i32, i32
  }
  func.func @transform_13(%arg0: i32) -> (i32, i32) {
    %c0_i32 = arith.constant 0 : i32
    %c0_i32_0 = arith.constant 0 : i32
    %c0_i32_1 = arith.constant 0 : i32
    return %c0_i32, %c0_i32_0 : i32, i32
  }
  func.func @transform_14(%arg0: i32) -> (i32, i32) {
    %c0_i32 = arith.constant 0 : i32
    %c0_i32_0 = arith.constant 0 : i32
    %c0_i32_1 = arith.constant 0 : i32
    return %c0_i32, %c0_i32_0 : i32, i32
  }
  func.func @transform_15(%arg0: i32) -> (i32, i32) {
    %c0_i32 = arith.constant 0 : i32
    %c0_i32_0 = arith.constant 0 : i32
    %c0_i32_1 = arith.constant 0 : i32
    return %c0_i32, %c0_i32_0 : i32, i32
  }
  func.func @transform_16(%arg0: i32) -> (i32, i32) {
    %c0_i32 = arith.constant 0 : i32
    %c0_i32_0 = arith.constant 0 : i32
    %c0_i32_1 = arith.constant 0 : i32
    return %c0_i32, %c0_i32_0 : i32, i32
  }
  func.func @transform_17(%arg0: i32) -> (i32, i32) {
    %c0_i32 = arith.constant 0 : i32
    %c0_i32_0 = arith.constant 0 : i32
    %c0_i32_1 = arith.constant 0 : i32
    return %c0_i32, %c0_i32_0 : i32, i32
  }
  func.func @transform_18(%arg0: i32) -> (i32, i32) {
    %c0_i32 = arith.constant 0 : i32
    %c0_i32_0 = arith.constant 0 : i32
    %c0_i32_1 = arith.constant 0 : i32
    return %c0_i32, %c0_i32_0 : i32, i32
  }
}

</mosaic_0001>

<llo_original>
// kernel: tpu_custom_call.1
$region0: #{tpu_custom_call.1}
  #allocation0 [shape = 'u32[]', space=smem, size = 0x4, offset = 0x4, fixed_abs, tag = 'smem constant byte address 0x4 - core index']
  #allocation1 [shape = 'u32[72,128]{1,0:T(1,128)}', space=vmem, size = 0x9000, scoped, tag = 'internal scratch']
  #allocation2 [shape = 'f32[8,16,128]{2,1,0:T(8,128)}', space=vmem, size = 0x10000, scoped, tag = 'scratch operand']
  #allocation3 [shape = 'f32[8,16,128]{2,1,0:T(8,128)}', space=vmem, size = 0x10000, scoped, tag = 'scratch operand']
  #allocation4 [shape = 'f32[8,16,128]{2,1,0:T(8,128)}', space=vmem, size = 0x10000, scoped, tag = 'scratch operand']
  #allocation5 [shape = 'f32[8,128]{1,0:T(8,128)}', space=vmem, size = 0x1000, scoped, tag = 'scratch operand']
  %s0 = inlined_call_operand.vmem [shape: bf16[96,32], index: 0, kind: input, shape index: {}]
  %s1 = inlined_call_operand.vmem [shape: f32[16,1], index: 1, kind: input, shape index: {}]
  %s2 = inlined_call_operand.vmem [shape: bf16[32,64], index: 2, kind: input, shape index: {}]
  %s3 = inlined_call_operand.vmem [shape: f32[1,64], index: 3, kind: input, shape index: {}]
  %s4 = inlined_call_operand.vmem [shape: bf16[64,32], index: 4, kind: input, shape index: {}]
  %s5 = inlined_call_operand.vmem [shape: f32[1,32], index: 5, kind: input, shape index: {}]
  %s6 = inlined_call_operand.vmem [shape: bf16[32,32], index: 6, kind: input, shape index: {}]
  %s7 = inlined_call_operand.vmem [shape: f32[1,32], index: 7, kind: input, shape index: {}]
  %s8 = inlined_call_operand.vmem [shape: bf16[32,128], index: 8, kind: input, shape index: {}]
  %s9 = inlined_call_operand.vmem [shape: f32[4,64], index: 9, kind: input, shape index: {}]
  %s10 = inlined_call_operand.vmem [shape: f32[1,64], index: 10, kind: input, shape index: {}]
  %s11 = inlined_call_operand.vmem [shape: bf16[64,34], index: 11, kind: input, shape index: {}]
  %s12 = inlined_call_operand.vmem [shape: f32[2,64], index: 12, kind: input, shape index: {}]
  %s13 = inlined_call_operand.vmem [shape: f32[1,64], index: 13, kind: input, shape index: {}]
  %s14 = inlined_call_operand.vmem [shape: f32[16,64], index: 14, kind: input, shape index: {}]
  %s15 = inlined_call_operand.vmem [shape: f32[1,64], index: 15, kind: input, shape index: {}]
  %s16 = inlined_call_operand.vmem [shape: bf16[64,128], index: 16, kind: input, shape index: {}]
  %s17 = inlined_call_operand.vmem [shape: f32[1,128], index: 17, kind: input, shape index: {}]
  %s18 = inlined_call_operand.hbm [shape: f32[16,128], index: 18, kind: output, shape index: {}]
  %s19 = sld [smem:[#allocation0]]
  $region82: #{tpu_custom_call.1} parent=0
    _
  %s21 = ssub.s32 1, %s19
  %s22 = scalar_select 0, %s21, %s19
  $region1: #{tpu_custom_call.1} parent=0
    #allocation6 [shape = 'u8[8192]{0}', space=vmem, size = 0x2000, scoped, tag = 'output window, operand 0, single buffered']
    #allocation7 [shape = 's32[1]{0}', space=sflag, size = 0x4, scoped, tag = 'scoped memory for tpu_custom_call.1']
    %23 = vsyncpa [#allocation7], 0
    // Predicated region
    $region2: #{tpu_custom_call.1} parent=1 // pred_check
      _
    $region3: #{tpu_custom_call.1} parent=1 // pred_check_branch
      %25 = sbr.rel (0) target = $region5
    $region4: #{tpu_custom_call.1} parent=1 // pred_region
      _
    $region5: #{tpu_custom_call.1} parent=1 // pred_fallthru
      _
    // Predicated region
    $region6: #{tpu_custom_call.1} parent=1 // pred_check
      _
    $region7: #{tpu_custom_call.1} parent=1 // pred_check_branch
      %27 = sbr.rel (0) target = $region9
    $region8: #{tpu_custom_call.1} parent=1 // pred_region
      _
    $region9: #{tpu_custom_call.1} parent=1 // pred_fallthru
      _
    // Predicated region
    $region10: #{tpu_custom_call.1} parent=1 // pred_check
      _
    $region11: #{tpu_custom_call.1} parent=1 // pred_check_branch
      %29 = sbr.rel (0) target = $region13
    $region12: #{tpu_custom_call.1} parent=1 // pred_region
      _
    $region13: #{tpu_custom_call.1} parent=1 // pred_fallthru
      _
    // Predicated region
    $region14: #{tpu_custom_call.1} parent=1 // pred_check
      _
    $region15: #{tpu_custom_call.1} parent=1 // pred_check_branch
      %31 = sbr.rel (0) target = $region17
    $region16: #{tpu_custom_call.1} parent=1 // pred_region
      _
    $region17: #{tpu_custom_call.1} parent=1 // pred_fallthru
      _
    // Predicated region
    $region18: #{tpu_custom_call.1} parent=1 // pred_check
      _
    $region19: #{tpu_custom_call.1} parent=1 // pred_check_branch
      %33 = sbr.rel (0) target = $region21
    $region20: #{tpu_custom_call.1} parent=1 // pred_region
      _
    $region21: #{tpu_custom_call.1} parent=1 // pred_fallthru
      _
    // Predicated region
    $region22: #{tpu_custom_call.1} parent=1 // pred_check
      _
    $region23: #{tpu_custom_call.1} parent=1 // pred_check_branch
      %35 = sbr.rel (0) target = $region25
    $region24: #{tpu_custom_call.1} parent=1 // pred_region
      _
    $region25: #{tpu_custom_call.1} parent=1 // pred_fallthru
      _
    // Predicated region
    $region26: #{tpu_custom_call.1} parent=1 // pred_check
      _
    $region27: #{tpu_custom_call.1} parent=1 // pred_check_branch
      %37 = sbr.rel (0) target = $region29
    $region28: #{tpu_custom_call.1} parent=1 // pred_region
      _
    $region29: #{tpu_custom_call.1} parent=1 // pred_fallthru
      _
    // Predicated region
    $region30: #{tpu_custom_call.1} parent=1 // pred_check
      _
    $region31: #{tpu_custom_call.1} parent=1 // pred_check_branch
      %39 = sbr.rel (0) target = $region33
    $region32: #{tpu_custom_call.1} parent=1 // pred_region
      _
    $region33: #{tpu_custom_call.1} parent=1 // pred_fallthru
      _
    // Predicated region
    $region34: #{tpu_custom_call.1} parent=1 // pred_check
      _
    $region35: #{tpu_custom_call.1} parent=1 // pred_check_branch
      %41 = sbr.rel (0) target = $region37
    $region36: #{tpu_custom_call.1} parent=1 // pred_region
      _
    $region37: #{tpu_custom_call.1} parent=1 // pred_fallthru
      _
    // Predicated region
    $region38: #{tpu_custom_call.1} parent=1 // pred_check
      _
    $region39: #{tpu_custom_call.1} parent=1 // pred_check_branch
      %43 = sbr.rel (0) target = $region41
    $region40: #{tpu_custom_call.1} parent=1 // pred_region
      _
    $region41: #{tpu_custom_call.1} parent=1 // pred_fallthru
      _
    // Predicated region
    $region42: #{tpu_custom_call.1} parent=1 // pred_check
      _
    $region43: #{tpu_custom_call.1} parent=1 // pred_check_branch
      %45 = sbr.rel (0) target = $region45
    $region44: #{tpu_custom_call.1} parent=1 // pred_region
      _
    $region45: #{tpu_custom_call.1} parent=1 // pred_fallthru
      _
    // Predicated region
    $region46: #{tpu_custom_call.1} parent=1 // pred_check
      _
    $region47: #{tpu_custom_call.1} parent=1 // pred_check_branch
      %47 = sbr.rel (0) target = $region49
    $region48: #{tpu_custom_call.1} parent=1 // pred_region
      _
    $region49: #{tpu_custom_call.1} parent=1 // pred_fallthru
      _
    // Predicated region
    $region50: #{tpu_custom_call.1} parent=1 // pred_check
      _
    $region51: #{tpu_custom_call.1} parent=1 // pred_check_branch
      %49 = sbr.rel (0) target = $region53
    $region52: #{tpu_custom_call.1} parent=1 // pred_region
      _
    $region53: #{tpu_custom_call.1} parent=1 // pred_fallthru
      _
    // Predicated region
    $region54: #{tpu_custom_call.1} parent=1 // pred_check
      _
    $region55: #{tpu_custom_call.1} parent=1 // pred_check_branch
      %51 = sbr.rel (0) target = $region57
    $region56: #{tpu_custom_call.1} parent=1 // pred_region
      _
    $region57: #{tpu_custom_call.1} parent=1 // pred_fallthru
      _
    // Predicated region
    $region58: #{tpu_custom_call.1} parent=1 // pred_check
      _
    $region59: #{tpu_custom_call.1} parent=1 // pred_check_branch
      %53 = sbr.rel (0) target = $region61
    $region60: #{tpu_custom_call.1} parent=1 // pred_region
      _
    $region61: #{tpu_custom_call.1} parent=1 // pred_fallthru
      _
    // Predicated region
    $region62: #{tpu_custom_call.1} parent=1 // pred_check
      _
    $region63: #{tpu_custom_call.1} parent=1 // pred_check_branch
      %55 = sbr.rel (0) target = $region65
    $region64: #{tpu_custom_call.1} parent=1 // pred_region
      _
    $region65: #{tpu_custom_call.1} parent=1 // pred_fallthru
      _
    // Predicated region
    $region66: #{tpu_custom_call.1} parent=1 // pred_check
      _
    $region67: #{tpu_custom_call.1} parent=1 // pred_check_branch
      %57 = sbr.rel (0) target = $region69
    $region68: #{tpu_custom_call.1} parent=1 // pred_region
      _
    $region69: #{tpu_custom_call.1} parent=1 // pred_fallthru
      _
    // Predicated region
    $region70: #{tpu_custom_call.1} parent=1 // pred_check
      _
    $region71: #{tpu_custom_call.1} parent=1 // pred_check_branch
      %59 = sbr.rel (0) target = $region73
    $region72: #{tpu_custom_call.1} parent=1 // pred_region
      _
    $region73: #{tpu_custom_call.1} parent=1 // pred_fallthru
      _
    %v61 = vld [vmem:[%s0] sm:$0xf]
    %v62 = vld [vmem:[%s0 + $0x4] sm:$0xf]
    %v63 = vld [vmem:[%s0 + $0x8] sm:$0xf]
    %v64 = vld [vmem:[%s0 + $0xc] sm:$0xf]
    %v65 = vld [vmem:[%s0 + $0x10] sm:$0xf]
    %v66 = vld [vmem:[%s0 + $0x14] sm:$0xf]
    %v67 = vld [vmem:[%s0 + $0x18] sm:$0xf]
    %v68 = vld [vmem:[%s0 + $0x1c] sm:$0xf]
    %v69 = vld [vmem:[%s0 + $0x20] sm:$0xf]
    %v70 = vld [vmem:[%s0 + $0x24] sm:$0xf]
    %v71 = vld [vmem:[%s0 + $0x28] sm:$0xf]
    %v72 = vld [vmem:[%s0 + $0x2c] sm:$0xf]
    %v73 = vld [vmem:[%s2] sm:$0xf]
    %v74 = vld [vmem:[%s2 + $0x4] sm:$0xf]
    %v75 = vld [vmem:[%s2 + $0x8] sm:$0xf]
    %v76 = vld [vmem:[%s2 + $0xc] sm:$0xf]
    %v77 = vld [vmem:[%s3] sm:$0x1]
    %v79 = vperm.slane %v77, 0
    %v93 = vunpack.c.l.b16 %v61
    %v94 = vunpack.c.l.b16 %v62
    %v95 = vunpack.c.l.b16 %v63
    %v96 = vunpack.c.l.b16 %v64
    %v97 = vunpack.c.l.b16 %v65
    %v98 = vunpack.c.l.b16 %v66
    %v99 = vunpack.c.l.b16 %v67
    %v100 = vunpack.c.l.b16 %v68
    %v101 = vunpack.c.l.b16 %v69
    %v102 = vunpack.c.l.b16 %v70
    %v103 = vunpack.c.l.b16 %v71
    %v104 = vunpack.c.l.b16 %v72
    %v105 = vpack.c.b16 %v94, %v93
    %v106 = vpack.c.b16 %v96, %v95
    %v107 = vpack.c.b16 %v98, %v97
    %v108 = vpack.c.b16 %v100, %v99
    %v109 = vpack.c.b16 %v102, %v101
    %v110 = vpack.c.b16 %v104, %v103
    %v115 = vunpack.c.l.b16 %v73
    %v116 = vunpack.c.l.b16 %v74
    %v117 = vunpack.c.l.b16 %v75
    %v118 = vunpack.c.l.b16 %v76
    %v119 = vpack.c.b16 %v116, %v115
    %v120 = vpack.c.b16 %v118, %v117
    %vm123 = vcmask 261120
    %v125 = vsel %vm123, %v105, 0
    %v128 = vsel %vm123, %v106, 0
    %v131 = vsel %vm123, %v107, 0
    %v134 = vsel %vm123, %v108, 0
    %v137 = vsel %vm123, %v109, 0
    %v140 = vsel %vm123, %v110, 0
    %142 = vmatpush.bf16.msra.mxu0 0
    %143 = vmatpush.bf16.msra.mxu0 0
    %144 = vmatpush.bf16.msra.mxu0 0
    %145 = vmatpush.bf16.msra.mxu0 0
    %146 = vmatpush.bf16.msra.mxu0 0
    %147 = vmatpush.bf16.msra.mxu0 0
    %148 = vmatpush.bf16.msra.mxu0 %v120
    %149 = vmatpush.bf16.msra.mxu0 %v119
    %150 = vmatmul.bf16.gmra.mxu0 %v125
    %v151 = vpop.f32.mrf.mxu0
    %v152 = vadd.f32 %v79, %v151
    %v153 = vpop.f32.mrf.mxu0
    %v154 = vadd.f32 %v79, %v153
    %155 = vmatmul.bf16.gmra.mxu0 %v128
    %v156 = vpop.f32.mrf.mxu0
    %v157 = vadd.f32 %v79, %v156
    %v158 = vpop.f32.mrf.mxu0
    %v159 = vadd.f32 %v79, %v158
    %160 = vmatmul.bf16.gmra.mxu0 %v131
    %v161 = vpop.f32.mrf.mxu0
    %v162 = vadd.f32 %v79, %v161
    %v163 = vpop.f32.mrf.mxu0
    %v164 = vadd.f32 %v79, %v163
    %165 = vmatmul.bf16.gmra.mxu0 %v134
    %v166 = vpop.f32.mrf.mxu0
    %v167 = vadd.f32 %v79, %v166
    %v168 = vpop.f32.mrf.mxu0
    %v169 = vadd.f32 %v79, %v168
    %170 = vmatmul.bf16.gmra.mxu0 %v137
    %v171 = vpop.f32.mrf.mxu0
    %v172 = vadd.f32 %v79, %v171
    %v173 = vpop.f32.mrf.mxu0
    %v174 = vadd.f32 %v79, %v173
    %175 = vmatmul.bf16.gmra.mxu0 %v140
    %v176 = vpop.f32.mrf.mxu0
    %v177 = vadd.f32 %v79, %v176
    %v178 = vpop.f32.mrf.mxu0
    %v179 = vadd.f32 %v79, %v178
    %180 = vdwg.mxu0
    %v181 = vtanh.pop %v152
    %v182 = vtanh.pop %v154
    %v183 = vtanh.pop %v157
    %v184 = vtanh.pop %v159
    %v185 = vtanh.pop %v162
    %v186 = vtanh.pop %v164
    %v187 = vtanh.pop %v167
    %v188 = vtanh.pop %v169
    %v189 = vtanh.pop %v172
    %v190 = vtanh.pop %v174
    %v191 = vtanh.pop %v177
    %v192 = vtanh.pop %v179
    %v193 = vadd.f32 %v181, 0.0
    %v194 = vadd.f32 %v182, 0.0
    %v195 = vadd.f32 %v193, %v183
    %v196 = vadd.f32 %v194, %v184
    %v197 = vadd.f32 %v195, %v185
    %v198 = vadd.f32 %v196, %v186
    %v199 = vadd.f32 %v197, %v187
    %v200 = vadd.f32 %v198, %v188
    %v201 = vadd.f32 %v199, %v189
    %v202 = vadd.f32 %v200, %v190
    %v203 = vadd.f32 %v201, %v191
    %v204 = vadd.f32 %v202, %v192
    %v205 = vmul.f32 %v203, 0.16666667
    %v206 = vmul.f32 %v204, 0.16666667
    %v207 = vpack.c.bf16 %v206, %v205
    %v208 = vld [vmem:[%s4] sm:$0xf]
    %v209 = vld [vmem:[%s4 + $0x4] sm:$0xf]
    %v210 = vld [vmem:[%s4 + $0x8] sm:$0xf]
    %v211 = vld [vmem:[%s4 + $0xc] sm:$0xf]
    %v212 = vld [vmem:[%s4 + $0x10] sm:$0xf]
    %v213 = vld [vmem:[%s4 + $0x14] sm:$0xf]
    %v214 = vld [vmem:[%s4 + $0x18] sm:$0xf]
    %v215 = vld [vmem:[%s4 + $0x1c] sm:$0xf]
    %v216 = vld [vmem:[%s5] sm:$0x1]
    %v218 = vperm.slane %v216, 0
    %v228 = vunpack.c.l.b16 %v208
    %v229 = vunpack.c.l.b16 %v209
    %v230 = vunpack.c.l.b16 %v210
    %v231 = vunpack.c.l.b16 %v211
    %v232 = vunpack.c.l.b16 %v212
    %v233 = vunpack.c.l.b16 %v213
    %v234 = vunpack.c.l.b16 %v214
    %v235 = vunpack.c.l.b16 %v215
    %v236 = vpack.c.b16 %v229, %v228
    %v237 = vpack.c.b16 %v231, %v230
    %v238 = vpack.c.b16 %v233, %v232
    %v239 = vpack.c.b16 %v235, %v234
    %vm244 = vcmask 523264
    %v246 = vsel %vm244, %v207, 0
    %248 = vmatpush.bf16.msra.mxu0 0
    %249 = vmatpush.bf16.msra.mxu0 0
    %250 = vmatpush.bf16.msra.mxu0 0
    %251 = vmatpush.bf16.msra.mxu0 0
    %252 = vmatpush.bf16.msra.mxu0 %v239
    %253 = vmatpush.bf16.msra.mxu0 %v238
    %254 = vmatpush.bf16.msra.mxu0 %v237
    %255 = vmatpush.bf16.msra.mxu0 %v236
    %256 = vmatmul.bf16.gmra.mxu0 %v246
    %v257 = vpop.f32.mrf.mxu0
    %v258 = vadd.f32 %v218, %v257
    %v259 = vpop.f32.mrf.mxu0
    %v260 = vadd.f32 %v218, %v259
    %261 = vdwg.mxu0
    %vm262 = vcmp.gt.f32.partialorder %v258, 0.0
    %vm263 = vcmp.gt.f32.partialorder %v260, 0.0
    %v264 = vmin.f32 %v258, 0.0
    %v265 = vmin.f32 %v260, 0.0
    %v266 = vmul.f32 %v264, 1.442695
    %v267 = vpow.pop %v266
    %v268 = vmul.f32 %v265, 1.442695
    %v269 = vpow.pop %v268
    %v270 = vsub.f32 %v267, 1.0
    %v271 = vsub.f32 %v269, 1.0
    %v272 = vsel %vm262, %v258, %v270
    %v273 = vsel %vm263, %v260, %v271
    %v274 = vpack.c.bf16 %v273, %v272
    %v275 = vld [vmem:[%s6] sm:$0xf]
    %v276 = vld [vmem:[%s6 + $0x4] sm:$0xf]
    %v277 = vld [vmem:[%s6 + $0x8] sm:$0xf]
    %v278 = vld [vmem:[%s6 + $0xc] sm:$0xf]
    %v279 = vld [vmem:[%s7] sm:$0x1]
    %v281 = vperm.slane %v279, 0
    %v287 = vunpack.c.l.b16 %v275
    %v288 = vunpack.c.l.b16 %v276
    %v289 = vunpack.c.l.b16 %v277
    %v290 = vunpack.c.l.b16 %v278
    %v291 = vpack.c.b16 %v288, %v287
    %v292 = vpack.c.b16 %v290, %v289
    %v296 = vsel %vm123, %v274, 0
    %298 = vmatpush.bf16.msra.mxu0 0
    %299 = vmatpush.bf16.msra.mxu0 0
    %300 = vmatpush.bf16.msra.mxu0 0
    %301 = vmatpush.bf16.msra.mxu0 0
    %302 = vmatpush.bf16.msra.mxu0 0
    %303 = vmatpush.bf16.msra.mxu0 0
    %304 = vmatpush.bf16.msra.mxu0 %v292
    %305 = vmatpush.bf16.msra.mxu0 %v291
    %306 = vmatmul.bf16.gmra.mxu0 %v296
    %v307 = vpop.f32.mrf.mxu0
    %v308 = vadd.f32 %v281, %v307
    %v309 = vpop.f32.mrf.mxu0
    %v310 = vadd.f32 %v281, %v309
    %311 = vdwg.mxu0
    %v312 = vpack.c.bf16 %v310, %v308
    %v313 = vld [vmem:[%s8] sm:$0xf]
    %v314 = vld [vmem:[%s8 + $0x4] sm:$0xf]
    %v315 = vld [vmem:[%s8 + $0x8] sm:$0xf]
    %v316 = vld [vmem:[%s8 + $0xc] sm:$0xf]
    %v321 = vunpack.c.l.b16 %v313
    %v322 = vunpack.c.l.b16 %v314
    %v323 = vunpack.c.l.b16 %v315
    %v324 = vunpack.c.l.b16 %v316
    %v325 = vpack.c.b16 %v322, %v321
    %v326 = vpack.c.b16 %v324, %v323
    %v330 = vsel %vm123, %v312, 0
    %332 = vmatpush.bf16.msra.mxu0 0
    %333 = vmatpush.bf16.msra.mxu0 0
    %334 = vmatpush.bf16.msra.mxu0 0
    %335 = vmatpush.bf16.msra.mxu0 0
    %336 = vmatpush.bf16.msra.mxu0 0
    %337 = vmatpush.bf16.msra.mxu0 0
    %338 = vmatpush.bf16.msra.mxu0 %v326
    %339 = vmatpush.bf16.msra.mxu0 %v325
    %340 = vmatmul.bf16.gmra.mxu0 %v330
    %v341 = vpop.f32.mrf.mxu0
    %v342 = vadd.f32 0.0, %v341
    %v343 = vpop.f32.mrf.mxu0
    %v344 = vadd.f32 0.0, %v343
    %345 = vdwg.mxu0
    %v346 = vld [vmem:[%s1] sm:$0xff]
    %v347 = vld [vmem:[%s1 + $0x8] sm:$0xff]
    %v348 = vld [vmem:[%s10] sm:$0x1]
    %v350 = vperm.slane %v348, 0
    %v352 = vadd.f32 %v350, 0.0
    %vm355 = vcmask 1042432
    %v356 = vrot.slane %v342, 5
    %v357 = vrot.slane %v344, 5
    %v358 = vsel %vm355, %v356, %v357
    %v361 = vsel %vm355, 0.0, %v356
    %vm362 = vcmp.ge.f32.partialorder %v346, 3.0
    %vm363 = vcmp.ge.f32.partialorder %v347, 3.0
    %v364 = vsel %vm362, 1, 0
    %v365 = vsel %vm363, 1, 0
    %v366 = vcvt.s32.f32 %v364
    %v367 = vcvt.s32.f32 %v365
    %369 = vset.pattern.permute.xlu0 0
    %370 = vperm.xlu0 %369, %v366
    %v371 = vpop.permute.xlu0 %370
    %374 = vset.pattern.permute.xlu0 0
    %375 = vperm.xlu0 %374, %v367
    %v376 = vpop.permute.xlu0 %375
    %v378 = vmul.f32 %v361, %v371
    %v379 = vmul.f32 %v358, %v376
    %v380 = vld [vmem:[%s9] sm:$0x1]
    %v381 = vperm.slane %v380, 0
    %v382 = vmul.f32 %v381, %v378
    %v383 = vmul.f32 %v381, %v379
    %v384 = vadd.f32 %v352, %v382
    %v385 = vadd.f32 %v352, %v383
    %vm386 = vcmask 1041408
    %v387 = vrot.slane %v342, 6
    %v388 = vrot.slane %v344, 6
    %v389 = vsel %vm386, %v387, %v388
    %v392 = vsel %vm386, 0.0, %v387
    %vm393 = vcmp.ge.f32.partialorder %v346, 2.0
    %vm394 = vcmp.ge.f32.partialorder %v347, 2.0
    %v395 = vsel %vm393, 1, 0
    %v396 = vsel %vm394, 1, 0
    %v397 = vcvt.s32.f32 %v395
    %v398 = vcvt.s32.f32 %v396
    %400 = vset.pattern.permute.xlu0 0
    %401 = vperm.xlu0 %400, %v397
    %v402 = vpop.permute.xlu0 %401
    %405 = vset.pattern.permute.xlu0 0
    %406 = vperm.xlu0 %405, %v398
    %v407 = vpop.permute.xlu0 %406
    %v409 = vmul.f32 %v392, %v402
    %v410 = vmul.f32 %v389, %v407
    %v411 = vld [vmem:[%s9 + $0x1] sm:$0x1]
    %v412 = vperm.slane %v411, 0
    %v413 = vmul.f32 %v412, %v409
    %v414 = vmul.f32 %v412, %v410
    %v415 = vadd.f32 %v384, %v413
    %v416 = vadd.f32 %v385, %v414
    %vm417 = vcmask 1040384
    %v418 = vrot.slane %v342, 7
    %v419 = vrot.slane %v344, 7
    %v420 = vsel %vm417, %v418, %v419
    %v423 = vsel %vm417, 0.0, %v418
    %vm424 = vcmp.ge.f32.partialorder %v346, 1.0
    %vm425 = vcmp.ge.f32.partialorder %v347, 1.0
    %v426 = vsel %vm424, 1, 0
    %v427 = vsel %vm425, 1, 0
    %v428 = vcvt.s32.f32 %v426
    %v429 = vcvt.s32.f32 %v427
    %431 = vset.pattern.permute.xlu0 0
    %432 = vperm.xlu0 %431, %v428
    %v433 = vpop.permute.xlu0 %432
    %436 = vset.pattern.permute.xlu0 0
    %437 = vperm.xlu0 %436, %v429
    %v438 = vpop.permute.xlu0 %437
    %v440 = vmul.f32 %v423, %v433
    %v441 = vmul.f32 %v420, %v438
    %v442 = vld [vmem:[%s9 + $0x2] sm:$0x1]
    %v443 = vperm.slane %v442, 0
    %v444 = vmul.f32 %v443, %v440
    %v445 = vmul.f32 %v443, %v441
    %v446 = vadd.f32 %v415, %v444
    %v447 = vadd.f32 %v416, %v445
    %v448 = vld [vmem:[%s9 + $0x3] sm:$0x1]
    %v449 = vperm.slane %v448, 0
    %v450 = vmul.f32 %v449, %v342
    %v451 = vmul.f32 %v449, %v344
    %v452 = vadd.f32 %v446, %v450
    %v453 = vadd.f32 %v447, %v451
    %v454 = vand.u32 2147483647, %v452
    %v455 = vand.u32 2147483647, %v453
    %v456 = vsub.f32 0.0, %v454
    %v457 = vsub.f32 0.0, %v455
    %v458 = vmul.f32 %v456, 1.442695
    %v459 = vpow.pop %v458
    %v460 = vmul.f32 %v457, 1.442695
    %v461 = vpow.pop %v460
    %vm462 = vcmp.ge.f32.partialorder %v452, 0.0
    %vm463 = vcmp.ge.f32.partialorder %v453, 0.0
    %v464 = vadd.f32 %v459, 1.0
    %v465 = vadd.f32 %v461, 1.0
    %v466 = vrcp.pop %v464
    %v467 = vmul.f32 %v464, %v466
    %v468 = vsub.f32 1.0, %v467
    %v469 = vmul.f32 %v466, %v468
    %v470 = vadd.f32 %v466, %v469
    %vm471 = vweird.f32 %v464
    %vm472 = vweird.f32 %v466
    %vm473 = vmor %vm471, %vm472
    %v474 = vsel %vm473, %v466, %v470
    %v475 = vand.u32 2147483647, %v464
    %vm476 = vcmp.eq.f32.partialorder %v475, 8.507059e+37
    %v477 = vand.u32 %v464, 2147483648
    %v478 = vor.u32 1.1754944e-38, %v477
    %v479 = vsel %vm476, %v478, %v474
    %v480 = vmul.f32 1.0, %v479
    %v481 = vrcp.pop %v465
    %v482 = vmul.f32 %v465, %v481
    %v483 = vsub.f32 1.0, %v482
    %v484 = vmul.f32 %v481, %v483
    %v485 = vadd.f32 %v481, %v484
    %vm486 = vweird.f32 %v465
    %vm487 = vweird.f32 %v481
    %vm488 = vmor %vm486, %vm487
    %v489 = vsel %vm488, %v481, %v485
    %v490 = vand.u32 2147483647, %v465
    %vm491 = vcmp.eq.f32.partialorder %v490, 8.507059e+37
    %v492 = vand.u32 %v465, 2147483648
    %v493 = vor.u32 1.1754944e-38, %v492
    %v494 = vsel %vm491, %v493, %v489
    %v495 = vmul.f32 1.0, %v494
    %v496 = vmul.f32 %v459, %v479
    %v497 = vmul.f32 %v461, %v494
    %v498 = vsel %vm462, %v480, %v496
    %v499 = vsel %vm463, %v495, %v497
    %v500 = vmul.f32 %v452, %v498
    %v501 = vmul.f32 %v453, %v499
    %v502 = vpack.c.bf16 %v501, %v500
    %v503 = vld [vmem:[%s11] sm:$0xf]
    %v504 = vld [vmem:[%s11 + $0x4] sm:$0xf]
    %v505 = vld [vmem:[%s11 + $0x8] sm:$0xf]
    %v506 = vld [vmem:[%s11 + $0xc] sm:$0xf]
    %v507 = vld [vmem:[%s11 + $0x10] sm:$0xf]
    %v508 = vld [vmem:[%s11 + $0x14] sm:$0xf]
    %v509 = vld [vmem:[%s11 + $0x18] sm:$0xf]
    %v510 = vld [vmem:[%s11 + $0x1c] sm:$0xf]
    %v519 = vunpack.c.l.b16 %v503
    %v520 = vunpack.c.l.b16 %v504
    %v521 = vunpack.c.l.b16 %v505
    %v522 = vunpack.c.l.b16 %v506
    %v523 = vunpack.c.l.b16 %v507
    %v524 = vunpack.c.l.b16 %v508
    %v525 = vunpack.c.l.b16 %v509
    %v526 = vunpack.c.l.b16 %v510
    %v527 = vpack.c.b16 %v520, %v519
    %v528 = vpack.c.b16 %v522, %v521
    %v529 = vpack.c.b16 %v524, %v523
    %v530 = vpack.c.b16 %v526, %v525
    %v536 = vsel %vm244, %v502, 0
    %538 = vmatpush.bf16.msra.mxu0 0
    %539 = vmatpush.bf16.msra.mxu0 0
    %540 = vmatpush.bf16.msra.mxu0 0
    %541 = vmatpush.bf16.msra.mxu0 0
    %542 = vmatpush.bf16.msra.mxu0 %v530
    %543 = vmatpush.bf16.msra.mxu0 %v529
    %544 = vmatpush.bf16.msra.mxu0 %v528
    %545 = vmatpush.bf16.msra.mxu0 %v527
    %546 = vmatmul.bf16.gmra.mxu0 %v536
    %v547 = vpop.f32.mrf.mxu0
    %v548 = vadd.f32 0.0, %v547
    %v549 = vpop.f32.mrf.mxu0
    %v550 = vadd.f32 0.0, %v549
    %551 = vdwg.mxu0
    %v552 = vld [vmem:[%s13] sm:$0x1]
    %v554 = vperm.slane %v552, 0
    %v556 = vadd.f32 %v554, 0.0
    %v557 = vld [vmem:[%s12] sm:$0x1]
    %559 = vset.pattern.permute.xlu0 0
    %560 = vperm.xlu0 %559, %v548
    %v561 = vpop.permute.xlu0 %560
    %564 = vset.pattern.permute.xlu0 0
    %565 = vperm.xlu0 %564, %v550
    %v566 = vpop.permute.xlu0 %565
    %v568 = vperm.slane %v557, 0
    %v569 = vmul.f32 %v561, %v568
    %v570 = vmul.f32 %v566, %v568
    %v571 = vadd.f32 %v556, %v569
    %v572 = vadd.f32 %v556, %v570
    %v573 = vld [vmem:[%s12 + $0x1] sm:$0x1]
    %574 = vset.pattern.permute.xlu0 1
    %575 = vperm.xlu0 %574, %v548
    %v576 = vpop.permute.xlu0 %575
    %578 = vset.pattern.permute.xlu0 1
    %579 = vperm.xlu0 %578, %v550
    %v580 = vpop.permute.xlu0 %579
    %v582 = vperm.slane %v573, 0
    %v583 = vmul.f32 %v576, %v582
    %v584 = vmul.f32 %v580, %v582
    %v585 = vadd.f32 %v571, %v583
    %v586 = vadd.f32 %v572, %v584
    %v587 = vmax.f32 %v585, 0.0
    %v588 = vmax.f32 %v586, 0.0
    %v589 = vand.u32 2147483647, %v585
    %v590 = vand.u32 2147483647, %v586
    %v591 = vsub.f32 0.0, %v589
    %v592 = vsub.f32 0.0, %v590
    %v593 = vmul.f32 %v591, 1.442695
    %v594 = vpow.pop %v593
    %v595 = vmul.f32 %v592, 1.442695
    %v596 = vpow.pop %v595
    %v597 = vadd.f32 %v594, 1.0
    %v598 = vadd.f32 %v596, 1.0
    %v599 = vlog2.pop %v597
    %v600 = vmul.f32 %v599, 0.6931472
    %v601 = vlog2.pop %v598
    %v602 = vmul.f32 %v601, 0.6931472
    %v603 = vadd.f32 %v587, %v600
    %v604 = vadd.f32 %v588, %v602
    %v605 = vld [vmem:[%s14] sm:$0xff]
    %v606 = vld [vmem:[%s14 + $0x8] sm:$0xff]
    %v607 = vmul.f32 %v605, 1.442695
    %v608 = vpow.pop %v607
    %v609 = vmul.f32 %v606, 1.442695
    %v610 = vpow.pop %v609
    %v611 = vsub.f32 0.0, %v608
    %v612 = vsub.f32 0.0, %v610
    %v613 = vmul.f32 %v603, %v500
    %v614 = vmul.f32 %v604, %v501
    %v616 = vrot.slane %v603, 1
    %v617 = vrot.slane %v603, 2
    %v618 = vrot.slane %v603, 3
    %v619 = vrot.slane %v603, 4
    %v620 = vrot.slane %v603, 5
    %v621 = vrot.slane %v603, 6
    %v622 = vrot.slane %v603, 7
    %v623 = vperm.slane %v603, 0
    %v624 = vperm.slane %v616, 0
    %v625 = vperm.slane %v617, 0
    %v626 = vperm.slane %v618, 0
    %v627 = vperm.slane %v619, 0
    %v628 = vperm.slane %v620, 0
    %v629 = vperm.slane %v621, 0
    %v630 = vperm.slane %v622, 0
    %v639 = vmul.f32 %v623, %v611
    %v640 = vmul.f32 %v623, %v612
    %v641 = vmul.f32 %v624, %v611
    %v642 = vmul.f32 %v624, %v612
    %v643 = vmul.f32 %v625, %v611
    %v644 = vmul.f32 %v625, %v612
    %v645 = vmul.f32 %v626, %v611
    %v646 = vmul.f32 %v626, %v612
    %v647 = vmul.f32 %v627, %v611
    %v648 = vmul.f32 %v627, %v612
    %v649 = vmul.f32 %v628, %v611
    %v650 = vmul.f32 %v628, %v612
    %v651 = vmul.f32 %v629, %v611
    %v652 = vmul.f32 %v629, %v612
    %v653 = vmul.f32 %v630, %v611
    %v654 = vmul.f32 %v630, %v612
    %v655 = vmul.f32 %v639, 1.442695
    %v656 = vpow.pop %v655
    %v657 = vmul.f32 %v640, 1.442695
    %v658 = vpow.pop %v657
    %v659 = vmul.f32 %v641, 1.442695
    %v660 = vpow.pop %v659
    %v661 = vmul.f32 %v642, 1.442695
    %v662 = vpow.pop %v661
    %v663 = vmul.f32 %v643, 1.442695
    %v664 = vpow.pop %v663
    %v665 = vmul.f32 %v644, 1.442695
    %v666 = vpow.pop %v665
    %v667 = vmul.f32 %v645, 1.442695
    %v668 = vpow.pop %v667
    %v669 = vmul.f32 %v646, 1.442695
    %v670 = vpow.pop %v669
    %v671 = vmul.f32 %v647, 1.442695
    %v672 = vpow.pop %v671
    %v673 = vmul.f32 %v648, 1.442695
    %v674 = vpow.pop %v673
    %v675 = vmul.f32 %v649, 1.442695
    %v676 = vpow.pop %v675
    %v677 = vmul.f32 %v650, 1.442695
    %v678 = vpow.pop %v677
    %v679 = vmul.f32 %v651, 1.442695
    %v680 = vpow.pop %v679
    %v681 = vmul.f32 %v652, 1.442695
    %v682 = vpow.pop %v681
    %v683 = vmul.f32 %v653, 1.442695
    %v684 = vpow.pop %v683
    %v685 = vmul.f32 %v654, 1.442695
    %v686 = vpow.pop %v685
    %687 = vst.msk [vmem:[#allocation2] sm:$0xff] %vm244, %v656
    %688 = vst.msk [vmem:[#allocation2 + $0x8] sm:$0xff] %vm244, %v658
    %689 = vst.msk [vmem:[#allocation2 + $0x10] sm:$0xff] %vm244, %v660
    %690 = vst.msk [vmem:[#allocation2 + $0x18] sm:$0xff] %vm244, %v662
    %691 = vst.msk [vmem:[#allocation2 + $0x20] sm:$0xff] %vm244, %v664
    %692 = vst.msk [vmem:[#allocation2 + $0x28] sm:$0xff] %vm244, %v666
    %693 = vst.msk [vmem:[#allocation2 + $0x30] sm:$0xff] %vm244, %v668
    %694 = vst.msk [vmem:[#allocation2 + $0x38] sm:$0xff] %vm244, %v670
    %695 = vst.msk [vmem:[#allocation2 + $0x40] sm:$0xff] %vm244, %v672
    %696 = vst.msk [vmem:[#allocation2 + $0x48] sm:$0xff] %vm244, %v674
    %697 = vst.msk [vmem:[#allocation2 + $0x50] sm:$0xff] %vm244, %v676
    %698 = vst.msk [vmem:[#allocation2 + $0x58] sm:$0xff] %vm244, %v678
    %699 = vst.msk [vmem:[#allocation2 + $0x60] sm:$0xff] %vm244, %v680
    %700 = vst.msk [vmem:[#allocation2 + $0x68] sm:$0xff] %vm244, %v682
    %701 = vst.msk [vmem:[#allocation2 + $0x70] sm:$0xff] %vm244, %v684
    %702 = vst.msk [vmem:[#allocation2 + $0x78] sm:$0xff] %vm244, %v686
    %v703 = vperm.slane %v548, 0
    %v704 = vlaneseq
    %v705 = vshrl.u32 %v704, 7
    %v706 = vadd.s32 %v705, 2
    %707 = vset.pattern.permute.xlu0 %v706
    %708 = vperm.xlu0 %707, %v703
    %v709 = vpop.permute.xlu0 %708
    %v710 = vlaneseq
    %v711 = vshrl.u32 %v710, 7
    %v712 = vadd.s32 %v711, 10
    %713 = vset.pattern.permute.xlu0 %v712
    %714 = vperm.xlu0 %713, %v703
    %v715 = vpop.permute.xlu0 %714
    %v716 = vperm.slane %v548, 1
    %v717 = vlaneseq
    %v718 = vshrl.u32 %v717, 7
    %v719 = vadd.s32 %v718, 2
    %720 = vset.pattern.permute.xlu0 %v719
    %721 = vperm.xlu0 %720, %v716
    %v722 = vpop.permute.xlu0 %721
    %v723 = vlaneseq
    %v724 = vshrl.u32 %v723, 7
    %v725 = vadd.s32 %v724, 10
    %726 = vset.pattern.permute.xlu0 %v725
    %727 = vperm.xlu0 %726, %v716
    %v728 = vpop.permute.xlu0 %727
    %v729 = vperm.slane %v548, 2
    %v730 = vlaneseq
    %v731 = vshrl.u32 %v730, 7
    %v732 = vadd.s32 %v731, 2
    %733 = vset.pattern.permute.xlu0 %v732
    %734 = vperm.xlu0 %733, %v729
    %v735 = vpop.permute.xlu0 %734
    %v736 = vlaneseq
    %v737 = vshrl.u32 %v736, 7
    %v738 = vadd.s32 %v737, 10
    %739 = vset.pattern.permute.xlu0 %v738
    %740 = vperm.xlu0 %739, %v729
    %v741 = vpop.permute.xlu0 %740
    %v742 = vperm.slane %v548, 3
    %v743 = vlaneseq
    %v744 = vshrl.u32 %v743, 7
    %v745 = vadd.s32 %v744, 2
    %746 = vset.pattern.permute.xlu0 %v745
    %747 = vperm.xlu0 %746, %v742
    %v748 = vpop.permute.xlu0 %747
    %v749 = vlaneseq
    %v750 = vshrl.u32 %v749, 7
    %v751 = vadd.s32 %v750, 10
    %752 = vset.pattern.permute.xlu0 %v751
    %753 = vperm.xlu0 %752, %v742
    %v754 = vpop.permute.xlu0 %753
    %v755 = vperm.slane %v548, 4
    %v756 = vlaneseq
    %v757 = vshrl.u32 %v756, 7
    %v758 = vadd.s32 %v757, 2
    %759 = vset.pattern.permute.xlu0 %v758
    %760 = vperm.xlu0 %759, %v755
    %v761 = vpop.permute.xlu0 %760
    %v762 = vlaneseq
    %v763 = vshrl.u32 %v762, 7
    %v764 = vadd.s32 %v763, 10
    %765 = vset.pattern.permute.xlu0 %v764
    %766 = vperm.xlu0 %765, %v755
    %v767 = vpop.permute.xlu0 %766
    %v768 = vperm.slane %v548, 5
    %v769 = vlaneseq
    %v770 = vshrl.u32 %v769, 7
    %v771 = vadd.s32 %v770, 2
    %772 = vset.pattern.permute.xlu0 %v771
    %773 = vperm.xlu0 %772, %v768
    %v774 = vpop.permute.xlu0 %773
    %v775 = vlaneseq
    %v776 = vshrl.u32 %v775, 7
    %v777 = vadd.s32 %v776, 10
    %778 = vset.pattern.permute.xlu0 %v777
    %779 = vperm.xlu0 %778, %v768
    %v780 = vpop.permute.xlu0 %779
    %v781 = vperm.slane %v548, 6
    %v782 = vlaneseq
    %v783 = vshrl.u32 %v782, 7
    %v784 = vadd.s32 %v783, 2
    %785 = vset.pattern.permute.xlu0 %v784
    %786 = vperm.xlu0 %785, %v781
    %v787 = vpop.permute.xlu0 %786
    %v788 = vlaneseq
    %v789 = vshrl.u32 %v788, 7
    %v790 = vadd.s32 %v789, 10
    %791 = vset.pattern.permute.xlu0 %v790
    %792 = vperm.xlu0 %791, %v781
    %v793 = vpop.permute.xlu0 %792
    %v794 = vperm.slane %v548, 7
    %v795 = vlaneseq
    %v796 = vshrl.u32 %v795, 7
    %v797 = vadd.s32 %v796, 2
    %798 = vset.pattern.permute.xlu0 %v797
    %799 = vperm.xlu0 %798, %v794
    %v800 = vpop.permute.xlu0 %799
    %v801 = vlaneseq
    %v802 = vshrl.u32 %v801, 7
    %v803 = vadd.s32 %v802, 10
    %804 = vset.pattern.permute.xlu0 %v803
    %805 = vperm.xlu0 %804, %v794
    %v806 = vpop.permute.xlu0 %805
    %v808 = vrot.slane %v613, 1
    %v809 = vrot.slane %v613, 2
    %v810 = vrot.slane %v613, 3
    %v811 = vrot.slane %v613, 4
    %v812 = vrot.slane %v613, 5
    %v813 = vrot.slane %v613, 6
    %v814 = vrot.slane %v613, 7
    %v815 = vperm.slane %v613, 0
    %v816 = vperm.slane %v808, 0
    %v817 = vperm.slane %v809, 0
    %v818 = vperm.slane %v810, 0
    %v819 = vperm.slane %v811, 0
    %v820 = vperm.slane %v812, 0
    %v821 = vperm.slane %v813, 0
    %v822 = vperm.slane %v814, 0
    %v831 = vmul.f32 %v709, %v815
    %v832 = vmul.f32 %v715, %v815
    %v833 = vmul.f32 %v722, %v816
    %v834 = vmul.f32 %v728, %v816
    %v835 = vmul.f32 %v735, %v817
    %v836 = vmul.f32 %v741, %v817
    %v837 = vmul.f32 %v748, %v818
    %v838 = vmul.f32 %v754, %v818
    %v839 = vmul.f32 %v761, %v819
    %v840 = vmul.f32 %v767, %v819
    %v841 = vmul.f32 %v774, %v820
    %v842 = vmul.f32 %v780, %v820
    %v843 = vmul.f32 %v787, %v821
    %v844 = vmul.f32 %v793, %v821
    %v845 = vmul.f32 %v800, %v822
    %v846 = vmul.f32 %v806, %v822
    %847 = vst.msk [vmem:[#allocation3] sm:$0xff] %vm244, %v831
    %848 = vst.msk [vmem:[#allocation3 + $0x8] sm:$0xff] %vm244, %v832
    %849 = vst.msk [vmem:[#allocation3 + $0x10] sm:$0xff] %vm244, %v833
    %850 = vst.msk [vmem:[#allocation3 + $0x18] sm:$0xff] %vm244, %v834
    %851 = vst.msk [vmem:[#allocation3 + $0x20] sm:$0xff] %vm244, %v835
    %852 = vst.msk [vmem:[#allocation3 + $0x28] sm:$0xff] %vm244, %v836
    %853 = vst.msk [vmem:[#allocation3 + $0x30] sm:$0xff] %vm244, %v837
    %854 = vst.msk [vmem:[#allocation3 + $0x38] sm:$0xff] %vm244, %v838
    %855 = vst.msk [vmem:[#allocation3 + $0x40] sm:$0xff] %vm244, %v839
    %856 = vst.msk [vmem:[#allocation3 + $0x48] sm:$0xff] %vm244, %v840
    %857 = vst.msk [vmem:[#allocation3 + $0x50] sm:$0xff] %vm244, %v841
    %858 = vst.msk [vmem:[#allocation3 + $0x58] sm:$0xff] %vm244, %v842
    %859 = vst.msk [vmem:[#allocation3 + $0x60] sm:$0xff] %vm244, %v843
    %860 = vst.msk [vmem:[#allocation3 + $0x68] sm:$0xff] %vm244, %v844
    %861 = vst.msk [vmem:[#allocation3 + $0x70] sm:$0xff] %vm244, %v845
    %862 = vst.msk [vmem:[#allocation3 + $0x78] sm:$0xff] %vm244, %v846
    %v863 = vlaneseq
    %v864 = vshrl.u32 %v863, 7
    %v865 = vadd.s32 %v864, 18
    %866 = vset.pattern.permute.xlu0 %v865
    %867 = vperm.xlu0 %866, %v703
    %v868 = vpop.permute.xlu0 %867
    %v869 = vlaneseq
    %v870 = vshrl.u32 %v869, 7
    %v871 = vadd.s32 %v870, 26
    %872 = vset.pattern.permute.xlu0 %v871
    %873 = vperm.xlu0 %872, %v703
    %v874 = vpop.permute.xlu0 %873
    %v875 = vlaneseq
    %v876 = vshrl.u32 %v875, 7
    %v877 = vadd.s32 %v876, 18
    %878 = vset.pattern.permute.xlu0 %v877
    %879 = vperm.xlu0 %878, %v716
    %v880 = vpop.permute.xlu0 %879
    %v881 = vlaneseq
    %v882 = vshrl.u32 %v881, 7
    %v883 = vadd.s32 %v882, 26
    %884 = vset.pattern.permute.xlu0 %v883
    %885 = vperm.xlu0 %884, %v716
    %v886 = vpop.permute.xlu0 %885
    %v887 = vlaneseq
    %v888 = vshrl.u32 %v887, 7
    %v889 = vadd.s32 %v888, 18
    %890 = vset.pattern.permute.xlu0 %v889
    %891 = vperm.xlu0 %890, %v729
    %v892 = vpop.permute.xlu0 %891
    %v893 = vlaneseq
    %v894 = vshrl.u32 %v893, 7
    %v895 = vadd.s32 %v894, 26
    %896 = vset.pattern.permute.xlu0 %v895
    %897 = vperm.xlu0 %896, %v729
    %v898 = vpop.permute.xlu0 %897
    %v899 = vlaneseq
    %v900 = vshrl.u32 %v899, 7
    %v901 = vadd.s32 %v900, 18
    %902 = vset.pattern.permute.xlu0 %v901
    %903 = vperm.xlu0 %902, %v742
    %v904 = vpop.permute.xlu0 %903
    %v905 = vlaneseq
    %v906 = vshrl.u32 %v905, 7
    %v907 = vadd.s32 %v906, 26
    %908 = vset.pattern.permute.xlu0 %v907
    %909 = vperm.xlu0 %908, %v742
    %v910 = vpop.permute.xlu0 %909
    %v911 = vlaneseq
    %v912 = vshrl.u32 %v911, 7
    %v913 = vadd.s32 %v912, 18
    %914 = vset.pattern.permute.xlu0 %v913
    %915 = vperm.xlu0 %914, %v755
    %v916 = vpop.permute.xlu0 %915
    %v917 = vlaneseq
    %v918 = vshrl.u32 %v917, 7
    %v919 = vadd.s32 %v918, 26
    %920 = vset.pattern.permute.xlu0 %v919
    %921 = vperm.xlu0 %920, %v755
    %v922 = vpop.permute.xlu0 %921
    %v923 = vlaneseq
    %v924 = vshrl.u32 %v923, 7
    %v925 = vadd.s32 %v924, 18
    %926 = vset.pattern.permute.xlu0 %v925
    %927 = vperm.xlu0 %926, %v768
    %v928 = vpop.permute.xlu0 %927
    %v929 = vlaneseq
    %v930 = vshrl.u32 %v929, 7
    %v931 = vadd.s32 %v930, 26
    %932 = vset.pattern.permute.xlu0 %v931
    %933 = vperm.xlu0 %932, %v768
    %v934 = vpop.permute.xlu0 %933
    %v935 = vlaneseq
    %v936 = vshrl.u32 %v935, 7
    %v937 = vadd.s32 %v936, 18
    %938 = vset.pattern.permute.xlu0 %v937
    %939 = vperm.xlu0 %938, %v781
    %v940 = vpop.permute.xlu0 %939
    %v941 = vlaneseq
    %v942 = vshrl.u32 %v941, 7
    %v943 = vadd.s32 %v942, 26
    %944 = vset.pattern.permute.xlu0 %v943
    %945 = vperm.xlu0 %944, %v781
    %v946 = vpop.permute.xlu0 %945
    %v947 = vlaneseq
    %v948 = vshrl.u32 %v947, 7
    %v949 = vadd.s32 %v948, 18
    %950 = vset.pattern.permute.xlu0 %v949
    %951 = vperm.xlu0 %950, %v794
    %v952 = vpop.permute.xlu0 %951
    %v953 = vlaneseq
    %v954 = vshrl.u32 %v953, 7
    %v955 = vadd.s32 %v954, 26
    %956 = vset.pattern.permute.xlu0 %v955
    %957 = vperm.xlu0 %956, %v794
    %v958 = vpop.permute.xlu0 %957
    %959 = vst.msk [vmem:[#allocation4] sm:$0xff] %vm244, %v868
    %960 = vst.msk [vmem:[#allocation4 + $0x8] sm:$0xff] %vm244, %v874
    %961 = vst.msk [vmem:[#allocation4 + $0x10] sm:$0xff] %vm244, %v880
    %962 = vst.msk [vmem:[#allocation4 + $0x18] sm:$0xff] %vm244, %v886
    %963 = vst.msk [vmem:[#allocation4 + $0x20] sm:$0xff] %vm244, %v892
    %964 = vst.msk [vmem:[#allocation4 + $0x28] sm:$0xff] %vm244, %v898
    %965 = vst.msk [vmem:[#allocation4 + $0x30] sm:$0xff] %vm244, %v904
    %966 = vst.msk [vmem:[#allocation4 + $0x38] sm:$0xff] %vm244, %v910
    %967 = vst.msk [vmem:[#allocation4 + $0x40] sm:$0xff] %vm244, %v916
    %968 = vst.msk [vmem:[#allocation4 + $0x48] sm:$0xff] %vm244, %v922
    %969 = vst.msk [vmem:[#allocation4 + $0x50] sm:$0xff] %vm244, %v928
    %970 = vst.msk [vmem:[#allocation4 + $0x58] sm:$0xff] %vm244, %v934
    %971 = vst.msk [vmem:[#allocation4 + $0x60] sm:$0xff] %vm244, %v940
    %972 = vst.msk [vmem:[#allocation4 + $0x68] sm:$0xff] %vm244, %v946
    %973 = vst.msk [vmem:[#allocation4 + $0x70] sm:$0xff] %vm244, %v952
    %974 = vst.msk [vmem:[#allocation4 + $0x78] sm:$0xff] %vm244, %v958
    %v976 = vrot.slane %v604, 1
    %v977 = vrot.slane %v604, 2
    %v978 = vrot.slane %v604, 3
    %v979 = vrot.slane %v604, 4
    %v980 = vrot.slane %v604, 5
    %v981 = vrot.slane %v604, 6
    %v982 = vrot.slane %v604, 7
    %v983 = vperm.slane %v604, 0
    %v984 = vperm.slane %v976, 0
    %v985 = vperm.slane %v977, 0
    %v986 = vperm.slane %v978, 0
    %v987 = vperm.slane %v979, 0
    %v988 = vperm.slane %v980, 0
    %v989 = vperm.slane %v981, 0
    %v990 = vperm.slane %v982, 0
    %v999 = vmul.f32 %v983, %v611
    %v1000 = vmul.f32 %v983, %v612
    %v1001 = vmul.f32 %v984, %v611
    %v1002 = vmul.f32 %v984, %v612
    %v1003 = vmul.f32 %v985, %v611
    %v1004 = vmul.f32 %v985, %v612
    %v1005 = vmul.f32 %v986, %v611
    %v1006 = vmul.f32 %v986, %v612
    %v1007 = vmul.f32 %v987, %v611
    %v1008 = vmul.f32 %v987, %v612
    %v1009 = vmul.f32 %v988, %v611
    %v1010 = vmul.f32 %v988, %v612
    %v1011 = vmul.f32 %v989, %v611
    %v1012 = vmul.f32 %v989, %v612
    %v1013 = vmul.f32 %v990, %v611
    %v1014 = vmul.f32 %v990, %v612
    %v1015 = vmul.f32 %v999, 1.442695
    %v1016 = vpow.pop %v1015
    %v1017 = vmul.f32 %v1000, 1.442695
    %v1018 = vpow.pop %v1017
    %v1019 = vmul.f32 %v1001, 1.442695
    %v1020 = vpow.pop %v1019
    %v1021 = vmul.f32 %v1002, 1.442695
    %v1022 = vpow.pop %v1021
    %v1023 = vmul.f32 %v1003, 1.442695
    %v1024 = vpow.pop %v1023
    %v1025 = vmul.f32 %v1004, 1.442695
    %v1026 = vpow.pop %v1025
    %v1027 = vmul.f32 %v1005, 1.442695
    %v1028 = vpow.pop %v1027
    %v1029 = vmul.f32 %v1006, 1.442695
    %v1030 = vpow.pop %v1029
    %v1031 = vmul.f32 %v1007, 1.442695
    %v1032 = vpow.pop %v1031
    %v1033 = vmul.f32 %v1008, 1.442695
    %v1034 = vpow.pop %v1033
    %v1035 = vmul.f32 %v1009, 1.442695
    %v1036 = vpow.pop %v1035
    %v1037 = vmul.f32 %v1010, 1.442695
    %v1038 = vpow.pop %v1037
    %v1039 = vmul.f32 %v1011, 1.442695
    %v1040 = vpow.pop %v1039
    %v1041 = vmul.f32 %v1012, 1.442695
    %v1042 = vpow.pop %v1041
    %v1043 = vmul.f32 %v1013, 1.442695
    %v1044 = vpow.pop %v1043
    %v1045 = vmul.f32 %v1014, 1.442695
    %v1046 = vpow.pop %v1045
    %1063 = vrot.lane.b32.xlu0 %v1016, 64
    %v1064 = vpop.permute.xlu0 %1063
    %1065 = vrot.lane.b32.xlu0 %v1018, 64
    %v1066 = vpop.permute.xlu0 %1065
    %1067 = vrot.lane.b32.xlu0 %v1020, 64
    %v1068 = vpop.permute.xlu0 %1067
    %1069 = vrot.lane.b32.xlu0 %v1022, 64
    %v1070 = vpop.permute.xlu0 %1069
    %1071 = vrot.lane.b32.xlu0 %v1024, 64
    %v1072 = vpop.permute.xlu0 %1071
    %1073 = vrot.lane.b32.xlu0 %v1026, 64
    %v1074 = vpop.permute.xlu0 %1073
    %1075 = vrot.lane.b32.xlu0 %v1028, 64
    %v1076 = vpop.permute.xlu0 %1075
    %1077 = vrot.lane.b32.xlu0 %v1030, 64
    %v1078 = vpop.permute.xlu0 %1077
    %1079 = vrot.lane.b32.xlu0 %v1032, 64
    %v1080 = vpop.permute.xlu0 %1079
    %1081 = vrot.lane.b32.xlu0 %v1034, 64
    %v1082 = vpop.permute.xlu0 %1081
    %1083 = vrot.lane.b32.xlu0 %v1036, 64
    %v1084 = vpop.permute.xlu0 %1083
    %1085 = vrot.lane.b32.xlu0 %v1038, 64
    %v1086 = vpop.permute.xlu0 %1085
    %1087 = vrot.lane.b32.xlu0 %v1040, 64
    %v1088 = vpop.permute.xlu0 %1087
    %1089 = vrot.lane.b32.xlu0 %v1042, 64
    %v1090 = vpop.permute.xlu0 %1089
    %1091 = vrot.lane.b32.xlu0 %v1044, 64
    %v1092 = vpop.permute.xlu0 %1091
    %1093 = vrot.lane.b32.xlu0 %v1046, 64
    %v1094 = vpop.permute.xlu0 %1093
    %vm1111 = vcmask 1048064
    %1112 = vst.msk [vmem:[#allocation2] sm:$0xff] %vm1111, %v1064
    %1113 = vst.msk [vmem:[#allocation2 + $0x8] sm:$0xff] %vm1111, %v1066
    %1114 = vst.msk [vmem:[#allocation2 + $0x10] sm:$0xff] %vm1111, %v1068
    %1115 = vst.msk [vmem:[#allocation2 + $0x18] sm:$0xff] %vm1111, %v1070
    %1116 = vst.msk [vmem:[#allocation2 + $0x20] sm:$0xff] %vm1111, %v1072
    %1117 = vst.msk [vmem:[#allocation2 + $0x28] sm:$0xff] %vm1111, %v1074
    %1118 = vst.msk [vmem:[#allocation2 + $0x30] sm:$0xff] %vm1111, %v1076
    %1119 = vst.msk [vmem:[#allocation2 + $0x38] sm:$0xff] %vm1111, %v1078
    %1120 = vst.msk [vmem:[#allocation2 + $0x40] sm:$0xff] %vm1111, %v1080
    %1121 = vst.msk [vmem:[#allocation2 + $0x48] sm:$0xff] %vm1111, %v1082
    %1122 = vst.msk [vmem:[#allocation2 + $0x50] sm:$0xff] %vm1111, %v1084
    %1123 = vst.msk [vmem:[#allocation2 + $0x58] sm:$0xff] %vm1111, %v1086
    %1124 = vst.msk [vmem:[#allocation2 + $0x60] sm:$0xff] %vm1111, %v1088
    %1125 = vst.msk [vmem:[#allocation2 + $0x68] sm:$0xff] %vm1111, %v1090
    %1126 = vst.msk [vmem:[#allocation2 + $0x70] sm:$0xff] %vm1111, %v1092
    %1127 = vst.msk [vmem:[#allocation2 + $0x78] sm:$0xff] %vm1111, %v1094
    %v1128 = vperm.slane %v550, 0
    %v1129 = vlaneseq
    %v1130 = vshrl.u32 %v1129, 7
    %v1131 = vadd.s32 %v1130, 2
    %1132 = vset.pattern.permute.xlu0 %v1131
    %1133 = vperm.xlu0 %1132, %v1128
    %v1134 = vpop.permute.xlu0 %1133
    %v1135 = vlaneseq
    %v1136 = vshrl.u32 %v1135, 7
    %v1137 = vadd.s32 %v1136, 10
    %1138 = vset.pattern.permute.xlu0 %v1137
    %1139 = vperm.xlu0 %1138, %v1128
    %v1140 = vpop.permute.xlu0 %1139
    %v1141 = vperm.slane %v550, 1
    %v1142 = vlaneseq
    %v1143 = vshrl.u32 %v1142, 7
    %v1144 = vadd.s32 %v1143, 2
    %1145 = vset.pattern.permute.xlu0 %v1144
    %1146 = vperm.xlu0 %1145, %v1141
    %v1147 = vpop.permute.xlu0 %1146
    %v1148 = vlaneseq
    %v1149 = vshrl.u32 %v1148, 7
    %v1150 = vadd.s32 %v1149, 10
    %1151 = vset.pattern.permute.xlu0 %v1150
    %1152 = vperm.xlu0 %1151, %v1141
    %v1153 = vpop.permute.xlu0 %1152
    %v1154 = vperm.slane %v550, 2
    %v1155 = vlaneseq
    %v1156 = vshrl.u32 %v1155, 7
    %v1157 = vadd.s32 %v1156, 2
    %1158 = vset.pattern.permute.xlu0 %v1157
    %1159 = vperm.xlu0 %1158, %v1154
    %v1160 = vpop.permute.xlu0 %1159
    %v1161 = vlaneseq
    %v1162 = vshrl.u32 %v1161, 7
    %v1163 = vadd.s32 %v1162, 10
    %1164 = vset.pattern.permute.xlu0 %v1163
    %1165 = vperm.xlu0 %1164, %v1154
    %v1166 = vpop.permute.xlu0 %1165
    %v1167 = vperm.slane %v550, 3
    %v1168 = vlaneseq
    %v1169 = vshrl.u32 %v1168, 7
    %v1170 = vadd.s32 %v1169, 2
    %1171 = vset.pattern.permute.xlu0 %v1170
    %1172 = vperm.xlu0 %1171, %v1167
    %v1173 = vpop.permute.xlu0 %1172
    %v1174 = vlaneseq
    %v1175 = vshrl.u32 %v1174, 7
    %v1176 = vadd.s32 %v1175, 10
    %1177 = vset.pattern.permute.xlu0 %v1176
    %1178 = vperm.xlu0 %1177, %v1167
    %v1179 = vpop.permute.xlu0 %1178
    %v1180 = vperm.slane %v550, 4
    %v1181 = vlaneseq
    %v1182 = vshrl.u32 %v1181, 7
    %v1183 = vadd.s32 %v1182, 2
    %1184 = vset.pattern.permute.xlu0 %v1183
    %1185 = vperm.xlu0 %1184, %v1180
    %v1186 = vpop.permute.xlu0 %1185
    %v1187 = vlaneseq
    %v1188 = vshrl.u32 %v1187, 7
    %v1189 = vadd.s32 %v1188, 10
    %1190 = vset.pattern.permute.xlu0 %v1189
    %1191 = vperm.xlu0 %1190, %v1180
    %v1192 = vpop.permute.xlu0 %1191
    %v1193 = vperm.slane %v550, 5
    %v1194 = vlaneseq
    %v1195 = vshrl.u32 %v1194, 7
    %v1196 = vadd.s32 %v1195, 2
    %1197 = vset.pattern.permute.xlu0 %v1196
    %1198 = vperm.xlu0 %1197, %v1193
    %v1199 = vpop.permute.xlu0 %1198
    %v1200 = vlaneseq
    %v1201 = vshrl.u32 %v1200, 7
    %v1202 = vadd.s32 %v1201, 10
    %1203 = vset.pattern.permute.xlu0 %v1202
    %1204 = vperm.xlu0 %1203, %v1193
    %v1205 = vpop.permute.xlu0 %1204
    %v1206 = vperm.slane %v550, 6
    %v1207 = vlaneseq
    %v1208 = vshrl.u32 %v1207, 7
    %v1209 = vadd.s32 %v1208, 2
    %1210 = vset.pattern.permute.xlu0 %v1209
    %1211 = vperm.xlu0 %1210, %v1206
    %v1212 = vpop.permute.xlu0 %1211
    %v1213 = vlaneseq
    %v1214 = vshrl.u32 %v1213, 7
    %v1215 = vadd.s32 %v1214, 10
    %1216 = vset.pattern.permute.xlu0 %v1215
    %1217 = vperm.xlu0 %1216, %v1206
    %v1218 = vpop.permute.xlu0 %1217
    %v1219 = vperm.slane %v550, 7
    %v1220 = vlaneseq
    %v1221 = vshrl.u32 %v1220, 7
    %v1222 = vadd.s32 %v1221, 2
    %1223 = vset.pattern.permute.xlu0 %v1222
    %1224 = vperm.xlu0 %1223, %v1219
    %v1225 = vpop.permute.xlu0 %1224
    %v1226 = vlaneseq
    %v1227 = vshrl.u32 %v1226, 7
    %v1228 = vadd.s32 %v1227, 10
    %1229 = vset.pattern.permute.xlu0 %v1228
    %1230 = vperm.xlu0 %1229, %v1219
    %v1231 = vpop.permute.xlu0 %1230
    %v1233 = vrot.slane %v614, 1
    %v1234 = vrot.slane %v614, 2
    %v1235 = vrot.slane %v614, 3
    %v1236 = vrot.slane %v614, 4
    %v1237 = vrot.slane %v614, 5
    %v1238 = vrot.slane %v614, 6
    %v1239 = vrot.slane %v614, 7
    %v1240 = vperm.slane %v614, 0
    %v1241 = vperm.slane %v1233, 0
    %v1242 = vperm.slane %v1234, 0
    %v1243 = vperm.slane %v1235, 0
    %v1244 = vperm.slane %v1236, 0
    %v1245 = vperm.slane %v1237, 0
    %v1246 = vperm.slane %v1238, 0
    %v1247 = vperm.slane %v1239, 0
    %v1256 = vmul.f32 %v1134, %v1240
    %v1257 = vmul.f32 %v1140, %v1240
    %v1258 = vmul.f32 %v1147, %v1241
    %v1259 = vmul.f32 %v1153, %v1241
    %v1260 = vmul.f32 %v1160, %v1242
    %v1261 = vmul.f32 %v1166, %v1242
    %v1262 = vmul.f32 %v1173, %v1243
    %v1263 = vmul.f32 %v1179, %v1243
    %v1264 = vmul.f32 %v1186, %v1244
    %v1265 = vmul.f32 %v1192, %v1244
    %v1266 = vmul.f32 %v1199, %v1245
    %v1267 = vmul.f32 %v1205, %v1245
    %v1268 = vmul.f32 %v1212, %v1246
    %v1269 = vmul.f32 %v1218, %v1246
    %v1270 = vmul.f32 %v1225, %v1247
    %v1271 = vmul.f32 %v1231, %v1247
    %1288 = vrot.lane.b32.xlu0 %v1256, 64
    %v1289 = vpop.permute.xlu0 %1288
    %1290 = vrot.lane.b32.xlu0 %v1257, 64
    %v1291 = vpop.permute.xlu0 %1290
    %1292 = vrot.lane.b32.xlu0 %v1258, 64
    %v1293 = vpop.permute.xlu0 %1292
    %1294 = vrot.lane.b32.xlu0 %v1259, 64
    %v1295 = vpop.permute.xlu0 %1294
    %1296 = vrot.lane.b32.xlu0 %v1260, 64
    %v1297 = vpop.permute.xlu0 %1296
    %1298 = vrot.lane.b32.xlu0 %v1261, 64
    %v1299 = vpop.permute.xlu0 %1298
    %1300 = vrot.lane.b32.xlu0 %v1262, 64
    %v1301 = vpop.permute.xlu0 %1300
    %1302 = vrot.lane.b32.xlu0 %v1263, 64
    %v1303 = vpop.permute.xlu0 %1302
    %1304 = vrot.lane.b32.xlu0 %v1264, 64
    %v1305 = vpop.permute.xlu0 %1304
    %1306 = vrot.lane.b32.xlu0 %v1265, 64
    %v1307 = vpop.permute.xlu0 %1306
    %1308 = vrot.lane.b32.xlu0 %v1266, 64
    %v1309 = vpop.permute.xlu0 %1308
    %1310 = vrot.lane.b32.xlu0 %v1267, 64
    %v1311 = vpop.permute.xlu0 %1310
    %1312 = vrot.lane.b32.xlu0 %v1268, 64
    %v1313 = vpop.permute.xlu0 %1312
    %1314 = vrot.lane.b32.xlu0 %v1269, 64
    %v1315 = vpop.permute.xlu0 %1314
    %1316 = vrot.lane.b32.xlu0 %v1270, 64
    %v1317 = vpop.permute.xlu0 %1316
    %1318 = vrot.lane.b32.xlu0 %v1271, 64
    %v1319 = vpop.permute.xlu0 %1318
    %1336 = vst.msk [vmem:[#allocation3] sm:$0xff] %vm1111, %v1289
    %1337 = vst.msk [vmem:[#allocation3 + $0x8] sm:$0xff] %vm1111, %v1291
    %1338 = vst.msk [vmem:[#allocation3 + $0x10] sm:$0xff] %vm1111, %v1293
    %1339 = vst.msk [vmem:[#allocation3 + $0x18] sm:$0xff] %vm1111, %v1295
    %1340 = vst.msk [vmem:[#allocation3 + $0x20] sm:$0xff] %vm1111, %v1297
    %1341 = vst.msk [vmem:[#allocation3 + $0x28] sm:$0xff] %vm1111, %v1299
    %1342 = vst.msk [vmem:[#allocation3 + $0x30] sm:$0xff] %vm1111, %v1301
    %1343 = vst.msk [vmem:[#allocation3 + $0x38] sm:$0xff] %vm1111, %v1303
    %1344 = vst.msk [vmem:[#allocation3 + $0x40] sm:$0xff] %vm1111, %v1305
    %1345 = vst.msk [vmem:[#allocation3 + $0x48] sm:$0xff] %vm1111, %v1307
    %1346 = vst.msk [vmem:[#allocation3 + $0x50] sm:$0xff] %vm1111, %v1309
    %1347 = vst.msk [vmem:[#allocation3 + $0x58] sm:$0xff] %vm1111, %v1311
    %1348 = vst.msk [vmem:[#allocation3 + $0x60] sm:$0xff] %vm1111, %v1313
    %1349 = vst.msk [vmem:[#allocation3 + $0x68] sm:$0xff] %vm1111, %v1315
    %1350 = vst.msk [vmem:[#allocation3 + $0x70] sm:$0xff] %vm1111, %v1317
    %1351 = vst.msk [vmem:[#allocation3 + $0x78] sm:$0xff] %vm1111, %v1319
    %v1352 = vlaneseq
    %v1353 = vshrl.u32 %v1352, 7
    %v1354 = vadd.s32 %v1353, 18
    %1355 = vset.pattern.permute.xlu0 %v1354
    %1356 = vperm.xlu0 %1355, %v1128
    %v1357 = vpop.permute.xlu0 %1356
    %v1358 = vlaneseq
    %v1359 = vshrl.u32 %v1358, 7
    %v1360 = vadd.s32 %v1359, 26
    %1361 = vset.pattern.permute.xlu0 %v1360
    %1362 = vperm.xlu0 %1361, %v1128
    %v1363 = vpop.permute.xlu0 %1362
    %v1364 = vlaneseq
    %v1365 = vshrl.u32 %v1364, 7
    %v1366 = vadd.s32 %v1365, 18
    %1367 = vset.pattern.permute.xlu0 %v1366
    %1368 = vperm.xlu0 %1367, %v1141
    %v1369 = vpop.permute.xlu0 %1368
    %v1370 = vlaneseq
    %v1371 = vshrl.u32 %v1370, 7
    %v1372 = vadd.s32 %v1371, 26
    %1373 = vset.pattern.permute.xlu0 %v1372
    %1374 = vperm.xlu0 %1373, %v1141
    %v1375 = vpop.permute.xlu0 %1374
    %v1376 = vlaneseq
    %v1377 = vshrl.u32 %v1376, 7
    %v1378 = vadd.s32 %v1377, 18
    %1379 = vset.pattern.permute.xlu0 %v1378
    %1380 = vperm.xlu0 %1379, %v1154
    %v1381 = vpop.permute.xlu0 %1380
    %v1382 = vlaneseq
    %v1383 = vshrl.u32 %v1382, 7
    %v1384 = vadd.s32 %v1383, 26
    %1385 = vset.pattern.permute.xlu0 %v1384
    %1386 = vperm.xlu0 %1385, %v1154
    %v1387 = vpop.permute.xlu0 %1386
    %v1388 = vlaneseq
    %v1389 = vshrl.u32 %v1388, 7
    %v1390 = vadd.s32 %v1389, 18
    %1391 = vset.pattern.permute.xlu0 %v1390
    %1392 = vperm.xlu0 %1391, %v1167
    %v1393 = vpop.permute.xlu0 %1392
    %v1394 = vlaneseq
    %v1395 = vshrl.u32 %v1394, 7
    %v1396 = vadd.s32 %v1395, 26
    %1397 = vset.pattern.permute.xlu0 %v1396
    %1398 = vperm.xlu0 %1397, %v1167
    %v1399 = vpop.permute.xlu0 %1398
    %v1400 = vlaneseq
    %v1401 = vshrl.u32 %v1400, 7
    %v1402 = vadd.s32 %v1401, 18
    %1403 = vset.pattern.permute.xlu0 %v1402
    %1404 = vperm.xlu0 %1403, %v1180
    %v1405 = vpop.permute.xlu0 %1404
    %v1406 = vlaneseq
    %v1407 = vshrl.u32 %v1406, 7
    %v1408 = vadd.s32 %v1407, 26
    %1409 = vset.pattern.permute.xlu0 %v1408
    %1410 = vperm.xlu0 %1409, %v1180
    %v1411 = vpop.permute.xlu0 %1410
    %v1412 = vlaneseq
    %v1413 = vshrl.u32 %v1412, 7
    %v1414 = vadd.s32 %v1413, 18
    %1415 = vset.pattern.permute.xlu0 %v1414
    %1416 = vperm.xlu0 %1415, %v1193
    %v1417 = vpop.permute.xlu0 %1416
    %v1418 = vlaneseq
    %v1419 = vshrl.u32 %v1418, 7
    %v1420 = vadd.s32 %v1419, 26
    %1421 = vset.pattern.permute.xlu0 %v1420
    %1422 = vperm.xlu0 %1421, %v1193
    %v1423 = vpop.permute.xlu0 %1422
    %v1424 = vlaneseq
    %v1425 = vshrl.u32 %v1424, 7
    %v1426 = vadd.s32 %v1425, 18
    %1427 = vset.pattern.permute.xlu0 %v1426
    %1428 = vperm.xlu0 %1427, %v1206
    %v1429 = vpop.permute.xlu0 %1428
    %v1430 = vlaneseq
    %v1431 = vshrl.u32 %v1430, 7
    %v1432 = vadd.s32 %v1431, 26
    %1433 = vset.pattern.permute.xlu0 %v1432
    %1434 = vperm.xlu0 %1433, %v1206
    %v1435 = vpop.permute.xlu0 %1434
    %v1436 = vlaneseq
    %v1437 = vshrl.u32 %v1436, 7
    %v1438 = vadd.s32 %v1437, 18
    %1439 = vset.pattern.permute.xlu0 %v1438
    %1440 = vperm.xlu0 %1439, %v1219
    %v1441 = vpop.permute.xlu0 %1440
    %v1442 = vlaneseq
    %v1443 = vshrl.u32 %v1442, 7
    %v1444 = vadd.s32 %v1443, 26
    %1445 = vset.pattern.permute.xlu0 %v1444
    %1446 = vperm.xlu0 %1445, %v1219
    %v1447 = vpop.permute.xlu0 %1446
    %1448 = vst.msk [vmem:[#allocation4] sm:$0xff] %vm1111, %v1357
    %1449 = vst.msk [vmem:[#allocation4 + $0x8] sm:$0xff] %vm1111, %v1363
    %1450 = vst.msk [vmem:[#allocation4 + $0x10] sm:$0xff] %vm1111, %v1369
    %1451 = vst.msk [vmem:[#allocation4 + $0x18] sm:$0xff] %vm1111, %v1375
    %1452 = vst.msk [vmem:[#allocation4 + $0x20] sm:$0xff] %vm1111, %v1381
    %1453 = vst.msk [vmem:[#allocation4 + $0x28] sm:$0xff] %vm1111, %v1387
    %1454 = vst.msk [vmem:[#allocation4 + $0x30] sm:$0xff] %vm1111, %v1393
    %1455 = vst.msk [vmem:[#allocation4 + $0x38] sm:$0xff] %vm1111, %v1399
    %1456 = vst.msk [vmem:[#allocation4 + $0x40] sm:$0xff] %vm1111, %v1405
    %1457 = vst.msk [vmem:[#allocation4 + $0x48] sm:$0xff] %vm1111, %v1411
    %1458 = vst.msk [vmem:[#allocation4 + $0x50] sm:$0xff] %vm1111, %v1417
    %1459 = vst.msk [vmem:[#allocation4 + $0x58] sm:$0xff] %vm1111, %v1423
    %1460 = vst.msk [vmem:[#allocation4 + $0x60] sm:$0xff] %vm1111, %v1429
    %1461 = vst.msk [vmem:[#allocation4 + $0x68] sm:$0xff] %vm1111, %v1435
    %1462 = vst.msk [vmem:[#allocation4 + $0x70] sm:$0xff] %vm1111, %v1441
    %1463 = vst.msk [vmem:[#allocation4 + $0x78] sm:$0xff] %vm1111, %v1447
    %v1464 = vld [vmem:[#allocation2] sm:$0xff]
    %v1465 = vld [vmem:[#allocation2 + $0x8] sm:$0xff]
    %v1466 = vmul.f32 %v1464, 0.0
    %v1467 = vmul.f32 %v1465, 0.0
    %v1468 = vld [vmem:[#allocation3] sm:$0xff]
    %v1469 = vld [vmem:[#allocation3 + $0x8] sm:$0xff]
    %v1470 = vadd.f32 %v1466, %v1468
    %v1471 = vadd.f32 %v1467, %v1469
    %v1472 = vld [vmem:[#allocation4] sm:$0xff]
    %v1473 = vld [vmem:[#allocation4 + $0x8] sm:$0xff]
    %v1474 = vmul.f32 %v1472, %v1470
    %v1475 = vmul.f32 %v1473, %v1471
    %v1476 = vadd.f32 %v1474, %v1475
    %v1477 = vrot.slane %v1476, 4
    %v1478 = vadd.f32 %v1476, %v1477
    %v1479 = vrot.slane %v1478, 2
    %v1480 = vadd.f32 %v1478, %v1479
    %v1481 = vrot.slane %v1480, 1
    %v1482 = vadd.f32 %v1480, %v1481
    %1483 = vst [vmem:[#allocation5] sm:$0x1] %v1482
    %s1484 = scalar_lea.vmem [#allocation2], 16
    %v1485 = vld [vmem:[%s1484] sm:$0xff]
    %v1486 = vld [vmem:[%s1484 + $0x8] sm:$0xff]
    %v1487 = vmul.f32 %v1485, %v1470
    %v1488 = vmul.f32 %v1486, %v1471
    %s1489 = scalar_lea.vmem [#allocation3], 16
    %v1490 = vld [vmem:[%s1489] sm:$0xff]
    %v1491 = vld [vmem:[%s1489 + $0x8] sm:$0xff]
    %v1492 = vadd.f32 %v1487, %v1490
    %v1493 = vadd.f32 %v1488, %v1491
    %s1494 = scalar_lea.vmem [#allocation4], 16
    %v1495 = vld [vmem:[%s1494] sm:$0xff]
    %v1496 = vld [vmem:[%s1494 + $0x8] sm:$0xff]
    %v1497 = vmul.f32 %v1495, %v1492
    %v1498 = vmul.f32 %v1496, %v1493
    %v1499 = vadd.f32 %v1497, %v1498
    %v1500 = vrot.slane %v1499, 4
    %v1501 = vadd.f32 %v1499, %v1500
    %v1502 = vrot.slane %v1501, 2
    %v1503 = vadd.f32 %v1501, %v1502
    %v1504 = vrot.slane %v1503, 1
    %v1505 = vadd.f32 %v1503, %v1504
    %1506 = vst [vmem:[#allocation5 + $0x1] sm:$0x1] %v1505
    %s1507 = scalar_lea.vmem [#allocation2], 32
    %v1508 = vld [vmem:[%s1507] sm:$0xff]
    %v1509 = vld [vmem:[%s1507 + $0x8] sm:$0xff]
    %v1510 = vmul.f32 %v1508, %v1492
    %v1511 = vmul.f32 %v1509, %v1493
    %s1512 = scalar_lea.vmem [#allocation3], 32
    %v1513 = vld [vmem:[%s1512] sm:$0xff]
    %v1514 = vld [vmem:[%s1512 + $0x8] sm:$0xff]
    %v1515 = vadd.f32 %v1510, %v1513
    %v1516 = vadd.f32 %v1511, %v1514
    %s1517 = scalar_lea.vmem [#allocation4], 32
    %v1518 = vld [vmem:[%s1517] sm:$0xff]
    %v1519 = vld [vmem:[%s1517 + $0x8] sm:$0xff]
    %v1520 = vmul.f32 %v1518, %v1515
    %v1521 = vmul.f32 %v1519, %v1516
    %v1522 = vadd.f32 %v1520, %v1521
    %v1523 = vrot.slane %v1522, 4
    %v1524 = vadd.f32 %v1522, %v1523
    %v1525 = vrot.slane %v1524, 2
    %v1526 = vadd.f32 %v1524, %v1525
    %v1527 = vrot.slane %v1526, 1
    %v1528 = vadd.f32 %v1526, %v1527
    %1529 = vst [vmem:[#allocation5 + $0x2] sm:$0x1] %v1528
    %s1530 = scalar_lea.vmem [#allocation2], 48
    %v1531 = vld [vmem:[%s1530] sm:$0xff]
    %v1532 = vld [vmem:[%s1530 + $0x8] sm:$0xff]
    %v1533 = vmul.f32 %v1531, %v1515
    %v1534 = vmul.f32 %v1532, %v1516
    %s1535 = scalar_lea.vmem [#allocation3], 48
    %v1536 = vld [vmem:[%s1535] sm:$0xff]
    %v1537 = vld [vmem:[%s1535 + $0x8] sm:$0xff]
    %v1538 = vadd.f32 %v1533, %v1536
    %v1539 = vadd.f32 %v1534, %v1537
    %s1540 = scalar_lea.vmem [#allocation4], 48
    %v1541 = vld [vmem:[%s1540] sm:$0xff]
    %v1542 = vld [vmem:[%s1540 + $0x8] sm:$0xff]
    %v1543 = vmul.f32 %v1541, %v1538
    %v1544 = vmul.f32 %v1542, %v1539
    %v1545 = vadd.f32 %v1543, %v1544
    %v1546 = vrot.slane %v1545, 4
    %v1547 = vadd.f32 %v1545, %v1546
    %v1548 = vrot.slane %v1547, 2
    %v1549 = vadd.f32 %v1547, %v1548
    %v1550 = vrot.slane %v1549, 1
    %v1551 = vadd.f32 %v1549, %v1550
    %1552 = vst [vmem:[#allocation5 + $0x3] sm:$0x1] %v1551
    %s1553 = scalar_lea.vmem [#allocation2], 64
    %v1554 = vld [vmem:[%s1553] sm:$0xff]
    %v1555 = vld [vmem:[%s1553 + $0x8] sm:$0xff]
    %v1556 = vmul.f32 %v1554, %v1538
    %v1557 = vmul.f32 %v1555, %v1539
    %s1558 = scalar_lea.vmem [#allocation3], 64
    %v1559 = vld [vmem:[%s1558] sm:$0xff]
    %v1560 = vld [vmem:[%s1558 + $0x8] sm:$0xff]
    %v1561 = vadd.f32 %v1556, %v1559
    %v1562 = vadd.f32 %v1557, %v1560
    %s1563 = scalar_lea.vmem [#allocation4], 64
    %v1564 = vld [vmem:[%s1563] sm:$0xff]
    %v1565 = vld [vmem:[%s1563 + $0x8] sm:$0xff]
    %v1566 = vmul.f32 %v1564, %v1561
    %v1567 = vmul.f32 %v1565, %v1562
    %v1568 = vadd.f32 %v1566, %v1567
    %v1569 = vrot.slane %v1568, 4
    %v1570 = vadd.f32 %v1568, %v1569
    %v1571 = vrot.slane %v1570, 2
    %v1572 = vadd.f32 %v1570, %v1571
    %v1573 = vrot.slane %v1572, 1
    %v1574 = vadd.f32 %v1572, %v1573
    %1575 = vst [vmem:[#allocation5 + $0x4] sm:$0x1] %v1574
    %s1576 = scalar_lea.vmem [#allocation2], 80
    %v1577 = vld [vmem:[%s1576] sm:$0xff]
    %v1578 = vld [vmem:[%s1576 + $0x8] sm:$0xff]
    %v1579 = vmul.f32 %v1577, %v1561
    %v1580 = vmul.f32 %v1578, %v1562
    %s1581 = scalar_lea.vmem [#allocation3], 80
    %v1582 = vld [vmem:[%s1581] sm:$0xff]
    %v1583 = vld [vmem:[%s1581 + $0x8] sm:$0xff]
    %v1584 = vadd.f32 %v1579, %v1582
    %v1585 = vadd.f32 %v1580, %v1583
    %s1586 = scalar_lea.vmem [#allocation4], 80
    %v1587 = vld [vmem:[%s1586] sm:$0xff]
    %v1588 = vld [vmem:[%s1586 + $0x8] sm:$0xff]
    %v1589 = vmul.f32 %v1587, %v1584
    %v1590 = vmul.f32 %v1588, %v1585
    %v1591 = vadd.f32 %v1589, %v1590
    %v1592 = vrot.slane %v1591, 4
    %v1593 = vadd.f32 %v1591, %v1592
    %v1594 = vrot.slane %v1593, 2
    %v1595 = vadd.f32 %v1593, %v1594
    %v1596 = vrot.slane %v1595, 1
    %v1597 = vadd.f32 %v1595, %v1596
    %1598 = vst [vmem:[#allocation5 + $0x5] sm:$0x1] %v1597
    %s1599 = scalar_lea.vmem [#allocation2], 96
    %v1600 = vld [vmem:[%s1599] sm:$0xff]
    %v1601 = vld [vmem:[%s1599 + $0x8] sm:$0xff]
    %v1602 = vmul.f32 %v1600, %v1584
    %v1603 = vmul.f32 %v1601, %v1585
    %s1604 = scalar_lea.vmem [#allocation3], 96
    %v1605 = vld [vmem:[%s1604] sm:$0xff]
    %v1606 = vld [vmem:[%s1604 + $0x8] sm:$0xff]
    %v1607 = vadd.f32 %v1602, %v1605
    %v1608 = vadd.f32 %v1603, %v1606
    %s1609 = scalar_lea.vmem [#allocation4], 96
    %v1610 = vld [vmem:[%s1609] sm:$0xff]
    %v1611 = vld [vmem:[%s1609 + $0x8] sm:$0xff]
    %v1612 = vmul.f32 %v1610, %v1607
    %v1613 = vmul.f32 %v1611, %v1608
    %v1614 = vadd.f32 %v1612, %v1613
    %v1615 = vrot.slane %v1614, 4
    %v1616 = vadd.f32 %v1614, %v1615
    %v1617 = vrot.slane %v1616, 2
    %v1618 = vadd.f32 %v1616, %v1617
    %v1619 = vrot.slane %v1618, 1
    %v1620 = vadd.f32 %v1618, %v1619
    %1621 = vst [vmem:[#allocation5 + $0x6] sm:$0x1] %v1620
    %s1622 = scalar_lea.vmem [#allocation2], 112
    %v1623 = vld [vmem:[%s1622] sm:$0xff]
    %v1624 = vld [vmem:[%s1622 + $0x8] sm:$0xff]
    %v1625 = vmul.f32 %v1623, %v1607
    %v1626 = vmul.f32 %v1624, %v1608
    %s1627 = scalar_lea.vmem [#allocation3], 112
    %v1628 = vld [vmem:[%s1627] sm:$0xff]
    %v1629 = vld [vmem:[%s1627 + $0x8] sm:$0xff]
    %v1630 = vadd.f32 %v1625, %v1628
    %v1631 = vadd.f32 %v1626, %v1629
    %s1632 = scalar_lea.vmem [#allocation4], 112
    %v1633 = vld [vmem:[%s1632] sm:$0xff]
    %v1634 = vld [vmem:[%s1632 + $0x8] sm:$0xff]
    %v1635 = vmul.f32 %v1633, %v1630
    %v1636 = vmul.f32 %v1634, %v1631
    %v1637 = vadd.f32 %v1635, %v1636
    %v1638 = vrot.slane %v1637, 4
    %v1639 = vadd.f32 %v1637, %v1638
    %v1640 = vrot.slane %v1639, 2
    %v1641 = vadd.f32 %v1639, %v1640
    %v1642 = vrot.slane %v1641, 1
    %v1643 = vadd.f32 %v1641, %v1642
    %1644 = vst [vmem:[#allocation5 + $0x7] sm:$0x1] %v1643
    %v1645 = vld [vmem:[#allocation5] sm:$0xff]
    %1647 = vrot.lane.b32.xlu0 %v1645, 64
    %v1648 = vpop.permute.xlu0 %1647
    %v1650 = vld [vmem:[%s15] sm:$0x1]
    %v1652 = vperm.slane %v1650, 0
    %v1654 = vmul.f32 %v1652, %v500
    %v1655 = vmul.f32 %v1652, %v501
    %v1656 = vadd.f32 %v1645, %v1654
    %v1657 = vadd.f32 %v1648, %v1655
    %v1658 = vand.u32 2147483647, %v342
    %v1659 = vand.u32 2147483647, %v344
    %v1660 = vsub.f32 0.0, %v1658
    %v1661 = vsub.f32 0.0, %v1659
    %v1662 = vmul.f32 %v1660, 1.442695
    %v1663 = vpow.pop %v1662
    %v1664 = vmul.f32 %v1661, 1.442695
    %v1665 = vpow.pop %v1664
    %vm1666 = vcmp.ge.f32.partialorder %v342, 0.0
    %vm1667 = vcmp.ge.f32.partialorder %v344, 0.0
    %v1668 = vadd.f32 %v1663, 1.0
    %v1669 = vadd.f32 %v1665, 1.0
    %v1670 = vrcp.pop %v1668
    %v1671 = vmul.f32 %v1668, %v1670
    %v1672 = vsub.f32 1.0, %v1671
    %v1673 = vmul.f32 %v1670, %v1672
    %v1674 = vadd.f32 %v1670, %v1673
    %vm1675 = vweird.f32 %v1668
    %vm1676 = vweird.f32 %v1670
    %vm1677 = vmor %vm1675, %vm1676
    %v1678 = vsel %vm1677, %v1670, %v1674
    %v1679 = vand.u32 2147483647, %v1668
    %vm1680 = vcmp.eq.f32.partialorder %v1679, 8.507059e+37
    %v1681 = vand.u32 %v1668, 2147483648
    %v1682 = vor.u32 1.1754944e-38, %v1681
    %v1683 = vsel %vm1680, %v1682, %v1678
    %v1684 = vmul.f32 1.0, %v1683
    %v1685 = vrcp.pop %v1669
    %v1686 = vmul.f32 %v1669, %v1685
    %v1687 = vsub.f32 1.0, %v1686
    %v1688 = vmul.f32 %v1685, %v1687
    %v1689 = vadd.f32 %v1685, %v1688
    %vm1690 = vweird.f32 %v1669
    %vm1691 = vweird.f32 %v1685
    %vm1692 = vmor %vm1690, %vm1691
    %v1693 = vsel %vm1692, %v1685, %v1689
    %v1694 = vand.u32 2147483647, %v1669
    %vm1695 = vcmp.eq.f32.partialorder %v1694, 8.507059e+37
    %v1696 = vand.u32 %v1669, 2147483648
    %v1697 = vor.u32 1.1754944e-38, %v1696
    %v1698 = vsel %vm1695, %v1697, %v1693
    %v1699 = vmul.f32 1.0, %v1698
    %v1700 = vmul.f32 %v1663, %v1683
    %v1701 = vmul.f32 %v1665, %v1698
    %v1702 = vsel %vm1666, %v1684, %v1700
    %v1703 = vsel %vm1667, %v1699, %v1701
    %v1704 = vmul.f32 %v342, %v1702
    %v1705 = vmul.f32 %v344, %v1703
    %1708 = vrot.lane.b32.xlu0 %v1704, 64
    %v1709 = vpop.permute.xlu0 %1708
    %1710 = vrot.lane.b32.xlu0 %v1705, 64
    %v1711 = vpop.permute.xlu0 %1710
    %v1714 = vmul.f32 %v1656, %v1709
    %v1715 = vmul.f32 %v1657, %v1711
    %v1716 = vpack.c.bf16 %v1715, %v1714
    %v1717 = vld [vmem:[%s16] sm:$0xf]
    %v1718 = vld [vmem:[%s16 + $0x4] sm:$0xf]
    %v1719 = vld [vmem:[%s16 + $0x8] sm:$0xf]
    %v1720 = vld [vmem:[%s16 + $0xc] sm:$0xf]
    %v1721 = vld [vmem:[%s16 + $0x10] sm:$0xf]
    %v1722 = vld [vmem:[%s16 + $0x14] sm:$0xf]
    %v1723 = vld [vmem:[%s16 + $0x18] sm:$0xf]
    %v1724 = vld [vmem:[%s16 + $0x1c] sm:$0xf]
    %v1725 = vld [vmem:[%s17] sm:$0x1]
    %v1727 = vperm.slane %v1725, 0
    %v1737 = vunpack.c.l.b16 %v1717
    %v1738 = vunpack.c.l.b16 %v1718
    %v1739 = vunpack.c.l.b16 %v1719
    %v1740 = vunpack.c.l.b16 %v1720
    %v1741 = vunpack.c.l.b16 %v1721
    %v1742 = vunpack.c.l.b16 %v1722
    %v1743 = vunpack.c.l.b16 %v1723
    %v1744 = vunpack.c.l.b16 %v1724
    %v1745 = vpack.c.b16 %v1738, %v1737
    %v1746 = vpack.c.b16 %v1740, %v1739
    %v1747 = vpack.c.b16 %v1742, %v1741
    %v1748 = vpack.c.b16 %v1744, %v1743
    %v1754 = vsel %vm244, %v1716, 0
    %1756 = vmatpush.bf16.msra.mxu0 0
    %1757 = vmatpush.bf16.msra.mxu0 0
    %1758 = vmatpush.bf16.msra.mxu0 0
    %1759 = vmatpush.bf16.msra.mxu0 0
    %1760 = vmatpush.bf16.msra.mxu0 %v1748
    %1761 = vmatpush.bf16.msra.mxu0 %v1747
    %1762 = vmatpush.bf16.msra.mxu0 %v1746
    %1763 = vmatpush.bf16.msra.mxu0 %v1745
    %1764 = vmatmul.bf16.gmra.mxu0 %v1754
    %v1765 = vpop.f32.mrf.mxu0
    %v1766 = vadd.f32 %v1727, %v1765
    %v1767 = vpop.f32.mrf.mxu0
    %v1768 = vadd.f32 %v1727, %v1767
    %1769 = vdwg.mxu0
    %1770 = vst [vmem:[#allocation6] sm:$0xff] %v1766
    %1771 = vst [vmem:[#allocation6 + $0x8] sm:$0xff] %v1768
    // Predicated region
    $region74: #{tpu_custom_call.1} parent=1 // pred_check
      _
    $region75: #{tpu_custom_call.1} parent=1 // pred_check_branch
      %1773 = sbr.rel (0) target = $region77
    $region76: #{tpu_custom_call.1} parent=1 // pred_region
      %1775 = vsyncadd [#allocation7], 0
      %s1776 = sshll.u32 [#allocation6], 4
      %s1777 = int_to_ptr.vmem [resolvable:$true] %s1776
      %s1778 = sshll.u32 %s18, 4
      %s1779 = int_to_ptr.hbm [resolvable:$true] %s1778
      %1784 = dma.vmem_to_hbm [thread:$0]  %s1777, 256, %s1779, [#allocation7], 128, 128, 8
    $region77: #{tpu_custom_call.1} parent=1 // pred_fallthru
      _
    // Predicated region
    $region78: #{tpu_custom_call.1} parent=1 // pred_check
      _
    $region79: #{tpu_custom_call.1} parent=1 // pred_check_branch
      %1786 = sbr.rel (0) target = $region81
    $region80: #{tpu_custom_call.1} parent=1 // pred_region
      %1788 = dma.done [#allocation7], 256
    $region81: #{tpu_custom_call.1} parent=1 // pred_fallthru
      _
    %1789 = vsyncpa [#allocation7], 1

</llo_original>
